<compile_context>
chip_gen: v6e
topology: v6e:2x2x1
jax: 0.10.0
libtpu: 0.0.40
codegen_flags: <defaults>
</compile_context>

<pallas_src>
import functools

import jax
import jax.numpy as jnp
from jax.experimental import pallas as pl
from jax.experimental.pallas import tpu as pltpu


_LN_EPS = 1e-5                      # torch.nn.LayerNorm default
_INV_SQRT2 = 0.7071067811865476
_VMEM_LIMIT = 32 * 1024 * 1024      # scoped-VMEM request: safe on v5e/v6e/v7x
_VMEM_BUDGET = 20 * 1024 * 1024     # per-step working-set budget (headroom below limit)


def _round_up(x, m):
    return (x + m - 1) // m * m


def _cdiv(a, b):
    return -(-a // b)


def _erf(z):
    # Abramowitz & Stegun 7.1.26 rational approximation (max abs err ~1.5e-7,
    # below f32 noise for torch.nn.GELU()'s exact erf).
    a1, a2, a3, a4, a5 = 0.254829592, -0.284496736, 1.421413741, -1.453152027, 1.061405429
    p = 0.3275911
    s = jnp.where(z >= 0.0, 1.0, -1.0)
    az = jnp.abs(z)
    # EUP approx reciprocal: the divide would otherwise burn VALU slots.
    t = pl.reciprocal(1.0 + p * az, approx=True)
    poly = ((((a5 * t + a4) * t + a3) * t + a2) * t + a1) * t
    # TODO(synk): if the VALU ever becomes the binding slot (post HBM fixes),
    # replace the where/abs/sign-multiply with a copysign bit trick (pltpu.bitcast).
    return s * (1.0 - poly * jnp.exp(-az * az))


def _gelu_exact(u):
    # torch.nn.GELU() default (erf-based, not the tanh approximation).
    return 0.5 * u * (1.0 + _erf(u * _INV_SQRT2))


def _layernorm_cf(x, gamma, beta):
    """Two-pass LayerNorm over the channel (sublane) axis of a (C, T) tile."""
    inv_c = 1.0 / x.shape[0]
    mu = jnp.sum(x, axis=0, keepdims=True) * inv_c
    xc = x - mu
    var = jnp.sum(xc * xc, axis=0, keepdims=True) * inv_c
    return xc * jax.lax.rsqrt(var + _LN_EPS) * gamma + beta


def fnn_kernel(x_ref, g2_ref, b2_ref, w1_ref, b1_ref, w2_ref, c2_ref,
               gl_ref, bl_ref, o_ref, *, group):
    # x tile is channels-first: (C, TN) with TN on the lane axis (>=128 wide),
    # so every load/store is lane dense even for small C.
    x = x_ref[...].astype(jnp.float32)
    c = x.shape[0]
    cg = c // group

    # norm2 (LayerNorm over channels); bf16 operands for the MXU, f32 math.
    h = _layernorm_cf(x, g2_ref[...], b2_ref[...]).astype(jnp.bfloat16)

    # Grouped 1x1-conv MLP: each group is fully independent, so run the whole
    # fc1 -> GELU -> fc2 chain per group -- no block-diagonal zero blocks are
    # ever multiplied.  `group` is a small static int, so this unrolls.
    outs = []
    for gi in range(group):
        hg_in = h[gi * cg:(gi + 1) * cg, :]                         # (cg, TN) bf16
        u = jnp.dot(w1_ref[gi], hg_in,
                    preferred_element_type=jnp.float32) + b1_ref[gi]
        g = _gelu_exact(u)                                          # (hg, TN) f32
        outs.append(jnp.dot(w2_ref[gi], g.astype(jnp.bfloat16),
                            preferred_element_type=jnp.float32) + c2_ref[gi])
    v = outs[0] if group == 1 else jnp.concatenate(outs, axis=0)    # (C, TN) f32

    # residual + norml.
    o_ref[...] = _layernorm_cf(x + v, gl_ref[...], bl_ref[...]).astype(o_ref.dtype)


def _vmem_bytes_per_step(C, hidden, group, tn, x_bytes, out_bytes):
    hg = hidden // group
    cg = C // group
    stream = 2 * C * tn * (x_bytes + out_bytes)        # double-buffered in/out tiles
    weights = 2 * 2 * (hidden * cg) * 2                # w1 + w2 (bf16), double-buffered
    small = 2 * (group * (hg + cg) + 4 * C) * 4        # biases + LN params (tiny)
    live = (3 * C + 2 * hg) * tn * 4                   # x, h, v + per-group u, g (f32)
    return stream + weights + small + live


def _choose_token_tile(N, B, C, hidden, group, x_bytes, out_bytes,
                       token_tile, min_steps=8):
    """Largest lane-dense token tile that divides N (if possible), fits the
    VMEM budget, and still leaves enough grid steps for megacore + pipelining."""
    cap = max(128, min(_round_up(token_tile, 128), _round_up(N, 128)))
    if N % 128 == 0:
        cands = [t for t in range(128, cap + 1, 128) if N % t == 0]
    else:
        # Ragged N: any 128-multiple tile; the tail block is masked by Pallas
        # (no external pad/slice of the activation slab).
        cands = list(range(128, cap + 1, 128))
    fits = [t for t in cands
            if _vmem_bytes_per_step(C, hidden, group, t, x_bytes, out_bytes)
            <= _VMEM_BUDGET]
    cands = fits or [128]
    tn = max(cands)
    # Several steps per TensorCore (v7x megacore) so DMA/compute can overlap.
    while B * _cdiv(N, tn) < min_steps:
        smaller = [t for t in cands if t < tn]
        if not smaller:
            break
        tn = max(smaller)
    return tn


@functools.partial(jax.jit, static_argnames=("token_tile",))
def fnn_forward(x, params, token_tile=1024):
    """x: (B, C, H, W).  params: dict from init_params.  Returns same shape/dtype.

    All LayerNorm/GELU/residual math is f32 inside the kernel regardless of
    x.dtype; passing bf16 activations halves the streamed HBM traffic.
    """
    B, C, H, W = x.shape
    N = H * W
    group, hg, cg = params["w1"].shape
    hidden = group * hg
    if C % 8 != 0 or cg % 8 != 0:
        raise ValueError("fnn_forward requires C and C//group to be multiples of 8")
    if cg * group != C:
        raise ValueError("params do not match the channel dimension of x")

    # Native channels-first slab: (B, C, H, W) -> (B*C, N) is a free reshape,
    # so there are no layout transposes or pad/slice HBM round trips anywhere.
    x_cf = x.reshape(B * C, N)

    tn = _choose_token_tile(N, B, C, hidden, group,
                            x.dtype.itemsize, x.dtype.itemsize, token_tile)

    const2 = lambda shape: pl.BlockSpec(shape, lambda b, j: (0, 0))
    const3 = lambda shape: pl.BlockSpec(shape, lambda b, j: (0, 0, 0))

    out_cf = pl.pallas_call(
        functools.partial(fnn_kernel, group=group),
        out_shape=jax.ShapeDtypeStruct((B * C, N), x.dtype),
        grid=(B, _cdiv(N, tn)),
        in_specs=[
            pl.BlockSpec((C, tn), lambda b, j: (b, j)),   # streamed token tile
            const2((C, 1)),                               # norm2 gamma
            const2((C, 1)),                               # norm2 beta
            const3((group, hg, cg)),                      # fc1 per-group W (bf16)
            const3((group, hg, 1)),                       # fc1 bias
            const3((group, cg, hg)),                      # fc2 per-group W (bf16)
            const3((group, cg, 1)),                       # fc2 bias
            const2((C, 1)),                               # norml gamma
            const2((C, 1)),                               # norml beta
        ],
        out_specs=pl.BlockSpec((C, tn), lambda b, j: (b, j)),
        compiler_params=pltpu.CompilerParams(
            dimension_semantics=("parallel", "parallel"),  # megacore-shardable
            vmem_limit_bytes=_VMEM_LIMIT),
    )(x_cf, params["g2"], params["b2"], params["w1"], params["b1"],
      params["w2"], params["c2"], params["gl"], params["bl"])

    return out_cf.reshape(B, C, H, W)


def init_params(key, dim, mlp_ratio=2, group=2, dtype=jnp.float32,
                matmul_dtype=jnp.bfloat16):
    """Deterministic synthetic parameters matching FNN.__init__ shapes."""
    assert group >= 1 and dim % group == 0
    hidden = int(dim * mlp_ratio)
    assert hidden % group == 0
    cg = dim // group          # fc1 in-channels per group
    hg = hidden // group       # fc1 out-channels / fc2 in-channels per group

    ks = jax.random.split(key, 8)
    # Conv1d weights: fc1 (hidden, dim/group, 1), fc2 (dim, hidden/group, 1).
    w1_conv = 0.1 * jax.random.normal(ks[0], (hidden, cg, 1), dtype)
    b1 = 0.1 * jax.random.normal(ks[1], (hidden,), dtype)
    w2_conv = 0.1 * jax.random.normal(ks[2], (dim, hg, 1), dtype)
    b2c = 0.1 * jax.random.normal(ks[3], (dim,), dtype)
    g2 = 1.0 + 0.1 * jax.random.normal(ks[4], (dim,), dtype)
    be2 = 0.1 * jax.random.normal(ks[5], (dim,), dtype)
    gl = 1.0 + 0.1 * jax.random.normal(ks[6], (dim,), dtype)
    bel = 0.1 * jax.random.normal(ks[7], (dim,), dtype)

    # Per-group stacked (out, in) weight slabs for the channels-first kernel:
    # only the nonzero diagonal blocks of the grouped conv are stored / DMA'd.
    w1g = jnp.stack([w1_conv[gi * hg:(gi + 1) * hg, :, 0] for gi in range(group)])
    w2g = jnp.stack([w2_conv[gi * cg:(gi + 1) * cg, :, 0] for gi in range(group)])

    return {
        "g2": g2.reshape(dim, 1), "b2": be2.reshape(dim, 1),
        "w1": w1g.astype(matmul_dtype),                 # (group, hg, cg)
        "b1": b1.reshape(group, hg, 1),
        "w2": w2g.astype(matmul_dtype),                 # (group, cg, hg)
        "c2": b2c.reshape(group, cg, 1),
        "gl": gl.reshape(dim, 1), "bl": bel.reshape(dim, 1),
    }


def _reference(x, params, matmul_in_bf16):
    """Pure-JAX (token-major) reference of the FNN forward."""
    B, C, H, W = x.shape
    N = H * W
    t = jnp.transpose(x.reshape(B, C, N), (0, 2, 1)).astype(jnp.float32)  # (B, N, C)

    def ln(z, g, b):
        mu = jnp.mean(z, axis=-1, keepdims=True)
        var = jnp.mean((z - mu) ** 2, axis=-1, keepdims=True)
        return (z - mu) * jax.lax.rsqrt(var + _LN_EPS) * g + b

    g2, b2 = params["g2"][:, 0], params["b2"][:, 0]
    gl, bl = params["gl"][:, 0], params["bl"][:, 0]
    group, hg, cg = params["w1"].shape
    b1 = params["b1"][..., 0]                 # (group, hg)
    c2 = params["c2"][..., 0]                 # (group, cg)
    w1, w2 = params["w1"], params["w2"]       # bf16 per-group weights

    def mm(eq, a, w):
        if matmul_in_bf16:
            return jnp.einsum(eq, a.astype(jnp.bfloat16), w,
                              preferred_element_type=jnp.float32)
        return jnp.einsum(eq, a, w.astype(jnp.float32),
                          preferred_element_type=jnp.float32)

    h = ln(t, g2, b2).reshape(B, N, group, cg)
    u = mm("bngc,ghc->bngh", h, w1) + b1
    g = 0.5 * u * (1.0 + jax.scipy.special.erf(u * _INV_SQRT2))
    v = (mm("bngh,gch->bngc", g, w2) + c2).reshape(B, N, C)
    y = ln(t + v, gl, bl)
    return jnp.transpose(y, (0, 2, 1)).reshape(B, C, H, W).astype(x.dtype)


if __name__ == "__main__":
    key = jax.random.PRNGKey(0)
    kx, kp = jax.random.split(key)

    B, C, H, W = 2, 32, 16, 16          # dim=32 -> hidden=64, group=2, N=256
    x = jax.random.normal(kx, (B, C, H, W), jnp.float32)
    params = init_params(kp, dim=C, mlp_ratio=2, group=2)

    out = jax.block_until_ready(fnn_forward(x, params))
    assert out.shape == (B, C, H, W) and out.dtype == x.dtype

    # Same-precision reference (bf16 matmul operands, f32 accumulation): tight.
    ref_bf16 = _reference(x, params, matmul_in_bf16=True)
    err_bf16 = float(jnp.max(jnp.abs(out - ref_bf16)))
    assert jnp.allclose(out, ref_bf16, atol=2e-2, rtol=2e-2), err_bf16

    # Full-f32-activation reference: looser, bounds the bf16-operand error.
    ref_f32 = _reference(x, params, matmul_in_bf16=False)
    err_f32 = float(jnp.max(jnp.abs(out - ref_f32)))
    assert jnp.allclose(out, ref_f32, atol=8e-2, rtol=8e-2), err_f32

    print("KERNEL_OK")
</pallas_src>

<mosaic_0001>
module attributes {stable_mosaic.version = 11 : i64} {
  func.func @fnn_kernel(%arg0: i32, %arg1: i32, %arg2: memref<32x128xf32, #tpu.memory_space<vmem>>, %arg3: memref<32x1xf32, #tpu.memory_space<vmem>>, %arg4: memref<32x1xf32, #tpu.memory_space<vmem>>, %arg5: memref<2x32x16xbf16, #tpu.memory_space<vmem>>, %arg6: memref<2x32x1xf32, #tpu.memory_space<vmem>>, %arg7: memref<2x16x32xbf16, #tpu.memory_space<vmem>>, %arg8: memref<2x16x1xf32, #tpu.memory_space<vmem>>, %arg9: memref<32x1xf32, #tpu.memory_space<vmem>>, %arg10: memref<32x1xf32, #tpu.memory_space<vmem>>, %arg11: memref<32x128xf32, #tpu.memory_space<vmem>>) attributes {dimension_semantics = [#tpu.dimension_semantics<parallel>, #tpu.dimension_semantics<parallel>], iteration_bounds = array<i64: 2, 2>, scalar_prefetch = 0 : i64, scratch_operands = 0 : i64, tpu.core_type = #tpu.core_type<tc>, window_params = [{transform_indices = @transform_0, window_bounds = array<i64: 32, 128>}, {pipeline_mode = #tpu.pipeline_mode<synchronous>, transform_indices = @transform_1, window_bounds = array<i64: 32, 1>}, {pipeline_mode = #tpu.pipeline_mode<synchronous>, transform_indices = @transform_2, window_bounds = array<i64: 32, 1>}, {pipeline_mode = #tpu.pipeline_mode<synchronous>, transform_indices = @transform_3, window_bounds = array<i64: 2, 32, 16>}, {pipeline_mode = #tpu.pipeline_mode<synchronous>, transform_indices = @transform_4, window_bounds = array<i64: 2, 32, 1>}, {pipeline_mode = #tpu.pipeline_mode<synchronous>, transform_indices = @transform_5, window_bounds = array<i64: 2, 16, 32>}, {pipeline_mode = #tpu.pipeline_mode<synchronous>, transform_indices = @transform_6, window_bounds = array<i64: 2, 16, 1>}, {pipeline_mode = #tpu.pipeline_mode<synchronous>, transform_indices = @transform_7, window_bounds = array<i64: 32, 1>}, {pipeline_mode = #tpu.pipeline_mode<synchronous>, transform_indices = @transform_8, window_bounds = array<i64: 32, 1>}, {transform_indices = @transform_9, window_bounds = array<i64: 32, 128>}]} {
    %c0 = arith.constant 0 : index
    %c0_0 = arith.constant 0 : index
    %0 = vector.load %arg2[%c0, %c0_0] : memref<32x128xf32, #tpu.memory_space<vmem>>, vector<32x128xf32>
    %c0_1 = arith.constant 0 : index
    %c0_2 = arith.constant 0 : index
    %1 = vector.load %arg3[%c0_1, %c0_2] : memref<32x1xf32, #tpu.memory_space<vmem>>, vector<32x1xf32>
    %c0_3 = arith.constant 0 : index
    %c0_4 = arith.constant 0 : index
    %2 = vector.load %arg4[%c0_3, %c0_4] : memref<32x1xf32, #tpu.memory_space<vmem>>, vector<32x1xf32>
    %cst = arith.constant dense<0.000000e+00> : vector<128xf32>
    %3 = vector.multi_reduction <add>, %0, %cst [0] : vector<32x128xf32> to vector<128xf32>
    %4 = vector.shape_cast %3 : vector<128xf32> to vector<1x128xf32>
    %cst_5 = arith.constant 3.125000e-02 : f32
    %5 = vector.broadcast %cst_5 : f32 to vector<1x128xf32>
    %6 = arith.mulf %4, %5 : vector<1x128xf32>
    %7 = vector.broadcast %6 : vector<1x128xf32> to vector<32x128xf32>
    %8 = arith.subf %0, %7 : vector<32x128xf32>
    %9 = arith.mulf %8, %8 : vector<32x128xf32>
    %cst_6 = arith.constant dense<0.000000e+00> : vector<128xf32>
    %10 = vector.multi_reduction <add>, %9, %cst_6 [0] : vector<32x128xf32> to vector<128xf32>
    %11 = vector.shape_cast %10 : vector<128xf32> to vector<1x128xf32>
    %cst_7 = arith.constant 3.125000e-02 : f32
    %12 = vector.broadcast %cst_7 : f32 to vector<1x128xf32>
    %13 = arith.mulf %11, %12 : vector<1x128xf32>
    %cst_8 = arith.constant 9.99999974E-6 : f32
    %14 = vector.broadcast %cst_8 : f32 to vector<1x128xf32>
    %15 = arith.addf %13, %14 : vector<1x128xf32>
    %16 = math.rsqrt %15 : vector<1x128xf32>
    %17 = vector.broadcast %16 : vector<1x128xf32> to vector<32x128xf32>
    %18 = arith.mulf %8, %17 : vector<32x128xf32>
    %19 = vector.broadcast %1 : vector<32x1xf32> to vector<32x128xf32>
    %20 = arith.mulf %18, %19 : vector<32x128xf32>
    %21 = vector.broadcast %2 : vector<32x1xf32> to vector<32x128xf32>
    %22 = arith.addf %20, %21 : vector<32x128xf32>
    %23 = arith.truncf %22 : vector<32x128xf32> to vector<32x128xbf16>
    %24 = vector.extract_strided_slice %23 {offsets = [0, 0], sizes = [16, 128], strides = [1, 1]} : vector<32x128xbf16> to vector<16x128xbf16>
    %c0_9 = arith.constant 0 : index
    %c0_10 = arith.constant 0 : index
    %c0_11 = arith.constant 0 : index
    %25 = vector.load %arg5[%c0_9, %c0_10, %c0_11] : memref<2x32x16xbf16, #tpu.memory_space<vmem>>, vector<1x32x16xbf16>
    %26 = vector.shape_cast %25 : vector<1x32x16xbf16> to vector<32x16xbf16>
    %cst_12 = arith.constant dense<0.000000e+00> : vector<32x128xf32>
    %27 = tpu.matmul %26, %24, %cst_12 {dimension_numbers = #tpu.dot_dimension_numbers<[1], [0], [0], [1], [0, 0, 1, 1], [], []>} : vector<32x16xbf16>, vector<16x128xbf16>, vector<32x128xf32> -> vector<32x128xf32>
    %c0_13 = arith.constant 0 : index
    %c0_14 = arith.constant 0 : index
    %c0_15 = arith.constant 0 : index
    %28 = vector.load %arg6[%c0_13, %c0_14, %c0_15] : memref<2x32x1xf32, #tpu.memory_space<vmem>>, vector<1x32x1xf32>
    %29 = vector.shape_cast %28 : vector<1x32x1xf32> to vector<32x1xf32>
    %30 = vector.broadcast %29 : vector<32x1xf32> to vector<32x128xf32>
    %31 = arith.addf %27, %30 : vector<32x128xf32>
    %cst_16 = arith.constant 5.000000e-01 : f32
    %32 = vector.broadcast %cst_16 : f32 to vector<32x128xf32>
    %33 = arith.mulf %32, %31 : vector<32x128xf32>
    %cst_17 = arith.constant 0.707106769 : f32
    %34 = vector.broadcast %cst_17 : f32 to vector<32x128xf32>
    %35 = arith.mulf %31, %34 : vector<32x128xf32>
    %cst_18 = arith.constant 0.000000e+00 : f32
    %36 = vector.broadcast %cst_18 : f32 to vector<32x128xf32>
    %37 = arith.cmpf oge, %35, %36 : vector<32x128xf32>
    %cst_19 = arith.constant 1.000000e+00 : f32
    %cst_20 = arith.constant -1.000000e+00 : f32
    %38 = vector.broadcast %cst_19 : f32 to vector<32x128xf32>
    %39 = vector.broadcast %cst_20 : f32 to vector<32x128xf32>
    %40 = arith.select %37, %38, %39 : vector<32x128xi1>, vector<32x128xf32>
    %41 = math.absf %35 : vector<32x128xf32>
    %cst_21 = arith.constant 0.327591091 : f32
    %42 = vector.broadcast %cst_21 : f32 to vector<32x128xf32>
    %43 = arith.mulf %42, %41 : vector<32x128xf32>
    %cst_22 = arith.constant 1.000000e+00 : f32
    %44 = vector.broadcast %cst_22 : f32 to vector<32x128xf32>
    %45 = arith.addf %44, %43 : vector<32x128xf32>
    %46 = tpu.reciprocal %45 {approx = true} : vector<32x128xf32> -> vector<32x128xf32>
    %cst_23 = arith.constant 1.06140542 : f32
    %47 = vector.broadcast %cst_23 : f32 to vector<32x128xf32>
    %48 = arith.mulf %47, %46 : vector<32x128xf32>
    %cst_24 = arith.constant -1.45315206 : f32
    %49 = vector.broadcast %cst_24 : f32 to vector<32x128xf32>
    %50 = arith.addf %48, %49 : vector<32x128xf32>
    %51 = arith.mulf %50, %46 : vector<32x128xf32>
    %cst_25 = arith.constant 1.42141378 : f32
    %52 = vector.broadcast %cst_25 : f32 to vector<32x128xf32>
    %53 = arith.addf %51, %52 : vector<32x128xf32>
    %54 = arith.mulf %53, %46 : vector<32x128xf32>
    %cst_26 = arith.constant -0.284496725 : f32
    %55 = vector.broadcast %cst_26 : f32 to vector<32x128xf32>
    %56 = arith.addf %54, %55 : vector<32x128xf32>
    %57 = arith.mulf %56, %46 : vector<32x128xf32>
    %cst_27 = arith.constant 0.254829586 : f32
    %58 = vector.broadcast %cst_27 : f32 to vector<32x128xf32>
    %59 = arith.addf %57, %58 : vector<32x128xf32>
    %60 = arith.mulf %59, %46 : vector<32x128xf32>
    %cst_28 = arith.constant 0.000000e+00 : f32
    %61 = vector.broadcast %cst_28 : f32 to vector<32x128xf32>
    %62 = arith.subf %61, %41 : vector<32x128xf32>
    %63 = arith.mulf %62, %41 : vector<32x128xf32>
    %64 = math.exp %63 : vector<32x128xf32>
    %65 = arith.mulf %60, %64 : vector<32x128xf32>
    %cst_29 = arith.constant 1.000000e+00 : f32
    %66 = vector.broadcast %cst_29 : f32 to vector<32x128xf32>
    %67 = arith.subf %66, %65 : vector<32x128xf32>
    %68 = arith.mulf %40, %67 : vector<32x128xf32>
    %cst_30 = arith.constant 1.000000e+00 : f32
    %69 = vector.broadcast %cst_30 : f32 to vector<32x128xf32>
    %70 = arith.addf %69, %68 : vector<32x128xf32>
    %71 = arith.mulf %33, %70 : vector<32x128xf32>
    %c0_31 = arith.constant 0 : index
    %c0_32 = arith.constant 0 : index
    %c0_33 = arith.constant 0 : index
    %72 = vector.load %arg7[%c0_31, %c0_32, %c0_33] : memref<2x16x32xbf16, #tpu.memory_space<vmem>>, vector<1x16x32xbf16>
    %73 = vector.shape_cast %72 : vector<1x16x32xbf16> to vector<16x32xbf16>
    %74 = arith.truncf %71 : vector<32x128xf32> to vector<32x128xbf16>
    %cst_34 = arith.constant dense<0.000000e+00> : vector<16x128xf32>
    %75 = tpu.matmul %73, %74, %cst_34 {dimension_numbers = #tpu.dot_dimension_numbers<[1], [0], [0], [1], [0, 0, 1, 1], [], []>} : vector<16x32xbf16>, vector<32x128xbf16>, vector<16x128xf32> -> vector<16x128xf32>
    %c0_35 = arith.constant 0 : index
    %c0_36 = arith.constant 0 : index
    %c0_37 = arith.constant 0 : index
    %76 = vector.load %arg8[%c0_35, %c0_36, %c0_37] : memref<2x16x1xf32, #tpu.memory_space<vmem>>, vector<1x16x1xf32>
    %77 = vector.shape_cast %76 : vector<1x16x1xf32> to vector<16x1xf32>
    %78 = vector.broadcast %77 : vector<16x1xf32> to vector<16x128xf32>
    %79 = arith.addf %75, %78 : vector<16x128xf32>
    %80 = vector.extract_strided_slice %23 {offsets = [16, 0], sizes = [16, 128], strides = [1, 1]} : vector<32x128xbf16> to vector<16x128xbf16>
    %c1 = arith.constant 1 : index
    %c0_38 = arith.constant 0 : index
    %c0_39 = arith.constant 0 : index
    %81 = vector.load %arg5[%c1, %c0_38, %c0_39] : memref<2x32x16xbf16, #tpu.memory_space<vmem>>, vector<1x32x16xbf16>
    %82 = vector.shape_cast %81 : vector<1x32x16xbf16> to vector<32x16xbf16>
    %cst_40 = arith.constant dense<0.000000e+00> : vector<32x128xf32>
    %83 = tpu.matmul %82, %80, %cst_40 {dimension_numbers = #tpu.dot_dimension_numbers<[1], [0], [0], [1], [0, 0, 1, 1], [], []>} : vector<32x16xbf16>, vector<16x128xbf16>, vector<32x128xf32> -> vector<32x128xf32>
    %c1_41 = arith.constant 1 : index
    %c0_42 = arith.constant 0 : index
    %c0_43 = arith.constant 0 : index
    %84 = vector.load %arg6[%c1_41, %c0_42, %c0_43] : memref<2x32x1xf32, #tpu.memory_space<vmem>>, vector<1x32x1xf32>
    %85 = vector.shape_cast %84 : vector<1x32x1xf32> to vector<32x1xf32>
    %86 = vector.broadcast %85 : vector<32x1xf32> to vector<32x128xf32>
    %87 = arith.addf %83, %86 : vector<32x128xf32>
    %cst_44 = arith.constant 5.000000e-01 : f32
    %88 = vector.broadcast %cst_44 : f32 to vector<32x128xf32>
    %89 = arith.mulf %88, %87 : vector<32x128xf32>
    %cst_45 = arith.constant 0.707106769 : f32
    %90 = vector.broadcast %cst_45 : f32 to vector<32x128xf32>
    %91 = arith.mulf %87, %90 : vector<32x128xf32>
    %cst_46 = arith.constant 0.000000e+00 : f32
    %92 = vector.broadcast %cst_46 : f32 to vector<32x128xf32>
    %93 = arith.cmpf oge, %91, %92 : vector<32x128xf32>
    %cst_47 = arith.constant 1.000000e+00 : f32
    %cst_48 = arith.constant -1.000000e+00 : f32
    %94 = vector.broadcast %cst_47 : f32 to vector<32x128xf32>
    %95 = vector.broadcast %cst_48 : f32 to vector<32x128xf32>
    %96 = arith.select %93, %94, %95 : vector<32x128xi1>, vector<32x128xf32>
    %97 = math.absf %91 : vector<32x128xf32>
    %cst_49 = arith.constant 0.327591091 : f32
    %98 = vector.broadcast %cst_49 : f32 to vector<32x128xf32>
    %99 = arith.mulf %98, %97 : vector<32x128xf32>
    %cst_50 = arith.constant 1.000000e+00 : f32
    %100 = vector.broadcast %cst_50 : f32 to vector<32x128xf32>
    %101 = arith.addf %100, %99 : vector<32x128xf32>
    %102 = tpu.reciprocal %101 {approx = true} : vector<32x128xf32> -> vector<32x128xf32>
    %cst_51 = arith.constant 1.06140542 : f32
    %103 = vector.broadcast %cst_51 : f32 to vector<32x128xf32>
    %104 = arith.mulf %103, %102 : vector<32x128xf32>
    %cst_52 = arith.constant -1.45315206 : f32
    %105 = vector.broadcast %cst_52 : f32 to vector<32x128xf32>
    %106 = arith.addf %104, %105 : vector<32x128xf32>
    %107 = arith.mulf %106, %102 : vector<32x128xf32>
    %cst_53 = arith.constant 1.42141378 : f32
    %108 = vector.broadcast %cst_53 : f32 to vector<32x128xf32>
    %109 = arith.addf %107, %108 : vector<32x128xf32>
    %110 = arith.mulf %109, %102 : vector<32x128xf32>
    %cst_54 = arith.constant -0.284496725 : f32
    %111 = vector.broadcast %cst_54 : f32 to vector<32x128xf32>
    %112 = arith.addf %110, %111 : vector<32x128xf32>
    %113 = arith.mulf %112, %102 : vector<32x128xf32>
    %cst_55 = arith.constant 0.254829586 : f32
    %114 = vector.broadcast %cst_55 : f32 to vector<32x128xf32>
    %115 = arith.addf %113, %114 : vector<32x128xf32>
    %116 = arith.mulf %115, %102 : vector<32x128xf32>
    %cst_56 = arith.constant 0.000000e+00 : f32
    %117 = vector.broadcast %cst_56 : f32 to vector<32x128xf32>
    %118 = arith.subf %117, %97 : vector<32x128xf32>
    %119 = arith.mulf %118, %97 : vector<32x128xf32>
    %120 = math.exp %119 : vector<32x128xf32>
    %121 = arith.mulf %116, %120 : vector<32x128xf32>
    %cst_57 = arith.constant 1.000000e+00 : f32
    %122 = vector.broadcast %cst_57 : f32 to vector<32x128xf32>
    %123 = arith.subf %122, %121 : vector<32x128xf32>
    %124 = arith.mulf %96, %123 : vector<32x128xf32>
    %cst_58 = arith.constant 1.000000e+00 : f32
    %125 = vector.broadcast %cst_58 : f32 to vector<32x128xf32>
    %126 = arith.addf %125, %124 : vector<32x128xf32>
    %127 = arith.mulf %89, %126 : vector<32x128xf32>
    %c1_59 = arith.constant 1 : index
    %c0_60 = arith.constant 0 : index
    %c0_61 = arith.constant 0 : index
    %128 = vector.load %arg7[%c1_59, %c0_60, %c0_61] : memref<2x16x32xbf16, #tpu.memory_space<vmem>>, vector<1x16x32xbf16>
    %129 = vector.shape_cast %128 : vector<1x16x32xbf16> to vector<16x32xbf16>
    %130 = arith.truncf %127 : vector<32x128xf32> to vector<32x128xbf16>
    %cst_62 = arith.constant dense<0.000000e+00> : vector<16x128xf32>
    %131 = tpu.matmul %129, %130, %cst_62 {dimension_numbers = #tpu.dot_dimension_numbers<[1], [0], [0], [1], [0, 0, 1, 1], [], []>} : vector<16x32xbf16>, vector<32x128xbf16>, vector<16x128xf32> -> vector<16x128xf32>
    %c1_63 = arith.constant 1 : index
    %c0_64 = arith.constant 0 : index
    %c0_65 = arith.constant 0 : index
    %132 = vector.load %arg8[%c1_63, %c0_64, %c0_65] : memref<2x16x1xf32, #tpu.memory_space<vmem>>, vector<1x16x1xf32>
    %133 = vector.shape_cast %132 : vector<1x16x1xf32> to vector<16x1xf32>
    %134 = vector.broadcast %133 : vector<16x1xf32> to vector<16x128xf32>
    %135 = arith.addf %131, %134 : vector<16x128xf32>
    %136 = tpu.concatenate %79, %135 in 0 : vector<16x128xf32>, vector<16x128xf32> -> vector<32x128xf32>
    %137 = arith.addf %0, %136 : vector<32x128xf32>
    %c0_66 = arith.constant 0 : index
    %c0_67 = arith.constant 0 : index
    %138 = vector.load %arg9[%c0_66, %c0_67] : memref<32x1xf32, #tpu.memory_space<vmem>>, vector<32x1xf32>
    %c0_68 = arith.constant 0 : index
    %c0_69 = arith.constant 0 : index
    %139 = vector.load %arg10[%c0_68, %c0_69] : memref<32x1xf32, #tpu.memory_space<vmem>>, vector<32x1xf32>
    %cst_70 = arith.constant dense<0.000000e+00> : vector<128xf32>
    %140 = vector.multi_reduction <add>, %137, %cst_70 [0] : vector<32x128xf32> to vector<128xf32>
    %141 = vector.shape_cast %140 : vector<128xf32> to vector<1x128xf32>
    %cst_71 = arith.constant 3.125000e-02 : f32
    %142 = vector.broadcast %cst_71 : f32 to vector<1x128xf32>
    %143 = arith.mulf %141, %142 : vector<1x128xf32>
    %144 = vector.broadcast %143 : vector<1x128xf32> to vector<32x128xf32>
    %145 = arith.subf %137, %144 : vector<32x128xf32>
    %146 = arith.mulf %145, %145 : vector<32x128xf32>
    %cst_72 = arith.constant dense<0.000000e+00> : vector<128xf32>
    %147 = vector.multi_reduction <add>, %146, %cst_72 [0] : vector<32x128xf32> to vector<128xf32>
    %148 = vector.shape_cast %147 : vector<128xf32> to vector<1x128xf32>
    %cst_73 = arith.constant 3.125000e-02 : f32
    %149 = vector.broadcast %cst_73 : f32 to vector<1x128xf32>
    %150 = arith.mulf %148, %149 : vector<1x128xf32>
    %cst_74 = arith.constant 9.99999974E-6 : f32
    %151 = vector.broadcast %cst_74 : f32 to vector<1x128xf32>
    %152 = arith.addf %150, %151 : vector<1x128xf32>
    %153 = math.rsqrt %152 : vector<1x128xf32>
    %154 = vector.broadcast %153 : vector<1x128xf32> to vector<32x128xf32>
    %155 = arith.mulf %145, %154 : vector<32x128xf32>
    %156 = vector.broadcast %138 : vector<32x1xf32> to vector<32x128xf32>
    %157 = arith.mulf %155, %156 : vector<32x128xf32>
    %158 = vector.broadcast %139 : vector<32x1xf32> to vector<32x128xf32>
    %159 = arith.addf %157, %158 : vector<32x128xf32>
    %c0_75 = arith.constant 0 : index
    %c0_76 = arith.constant 0 : index
    %160 = vector.load %arg11[%c0_75, %c0_76] : memref<32x128xf32, #tpu.memory_space<vmem>>, vector<32x128xf32>
    tpu.vector_store %arg11[%c0_75, %c0_76], %159 {strides = array<i32>} : memref<32x128xf32, #tpu.memory_space<vmem>>, vector<32x128xf32>,
    return
  }
  func.func @transform_0(%arg0: i32, %arg1: i32) -> (i32, i32) {
    %c0_i32 = arith.constant 0 : i32
    return %arg0, %arg1 : i32, i32
  }
  func.func @transform_1(%arg0: i32, %arg1: i32) -> (i32, i32) {
    %c0_i32 = arith.constant 0 : i32
    %c0_i32_0 = arith.constant 0 : i32
    %c0_i32_1 = arith.constant 0 : i32
    return %c0_i32, %c0_i32_0 : i32, i32
  }
  func.func @transform_2(%arg0: i32, %arg1: i32) -> (i32, i32) {
    %c0_i32 = arith.constant 0 : i32
    %c0_i32_0 = arith.constant 0 : i32
    %c0_i32_1 = arith.constant 0 : i32
    return %c0_i32, %c0_i32_0 : i32, i32
  }
  func.func @transform_3(%arg0: i32, %arg1: i32) -> (i32, i32, i32) {
    %c0_i32 = arith.constant 0 : i32
    %c0_i32_0 = arith.constant 0 : i32
    %c0_i32_1 = arith.constant 0 : i32
    %c0_i32_2 = arith.constant 0 : i32
    return %c0_i32, %c0_i32_0, %c0_i32_1 : i32, i32, i32
  }
  func.func @transform_4(%arg0: i32, %arg1: i32) -> (i32, i32, i32) {
    %c0_i32 = arith.constant 0 : i32
    %c0_i32_0 = arith.constant 0 : i32
    %c0_i32_1 = arith.constant 0 : i32
    %c0_i32_2 = arith.constant 0 : i32
    return %c0_i32, %c0_i32_0, %c0_i32_1 : i32, i32, i32
  }
  func.func @transform_5(%arg0: i32, %arg1: i32) -> (i32, i32, i32) {
    %c0_i32 = arith.constant 0 : i32
    %c0_i32_0 = arith.constant 0 : i32
    %c0_i32_1 = arith.constant 0 : i32
    %c0_i32_2 = arith.constant 0 : i32
    return %c0_i32, %c0_i32_0, %c0_i32_1 : i32, i32, i32
  }
  func.func @transform_6(%arg0: i32, %arg1: i32) -> (i32, i32, i32) {
    %c0_i32 = arith.constant 0 : i32
    %c0_i32_0 = arith.constant 0 : i32
    %c0_i32_1 = arith.constant 0 : i32
    %c0_i32_2 = arith.constant 0 : i32
    return %c0_i32, %c0_i32_0, %c0_i32_1 : i32, i32, i32
  }
  func.func @transform_7(%arg0: i32, %arg1: i32) -> (i32, i32) {
    %c0_i32 = arith.constant 0 : i32
    %c0_i32_0 = arith.constant 0 : i32
    %c0_i32_1 = arith.constant 0 : i32
    return %c0_i32, %c0_i32_0 : i32, i32
  }
  func.func @transform_8(%arg0: i32, %arg1: i32) -> (i32, i32) {
    %c0_i32 = arith.constant 0 : i32
    %c0_i32_0 = arith.constant 0 : i32
    %c0_i32_1 = arith.constant 0 : i32
    return %c0_i32, %c0_i32_0 : i32, i32
  }
  func.func @transform_9(%arg0: i32, %arg1: i32) -> (i32, i32) {
    %c0_i32 = arith.constant 0 : i32
    return %arg0, %arg1 : i32, i32
  }
}

</mosaic_0001>

<llo_original>
// kernel: fnn_forward.1
$region0: #{fnn_forward.1}
  #allocation0 [shape = 'u32[]', space=smem, size = 0x4, offset = 0x4, fixed_abs, tag = 'smem constant byte address 0x4 - core index']
  #allocation1 [shape = 'u32[144,128]{1,0:T(1,128)}', space=vmem, size = 0x12000, scoped, tag = 'internal scratch']
  %s0 = inlined_call_operand.vmem [shape: f32[64,256], index: 0, kind: input, shape index: {}]
  %s1 = inlined_call_operand.vmem [shape: f32[32,1], index: 1, kind: input, shape index: {}]
  %s2 = inlined_call_operand.vmem [shape: f32[32,1], index: 2, kind: input, shape index: {}]
  %s3 = inlined_call_operand.vmem [shape: bf16[2,32,16], index: 3, kind: input, shape index: {}]
  %s4 = inlined_call_operand.vmem [shape: f32[2,32,1], index: 4, kind: input, shape index: {}]
  %s5 = inlined_call_operand.vmem [shape: bf16[2,16,32], index: 5, kind: input, shape index: {}]
  %s6 = inlined_call_operand.vmem [shape: f32[2,16,1], index: 6, kind: input, shape index: {}]
  %s7 = inlined_call_operand.vmem [shape: f32[32,1], index: 7, kind: input, shape index: {}]
  %s8 = inlined_call_operand.vmem [shape: f32[32,1], index: 8, kind: input, shape index: {}]
  %s9 = inlined_call_operand.vmem [shape: f32[64,256], index: 9, kind: output, shape index: {}]
  %s10 = sld [smem:[#allocation0]]
  $region141: #{fnn_forward.1} parent=0
    _
  %s12 = ssub.s32 1, %s10
  %s13 = scalar_select 0, %s12, %s10
  $region1: #{fnn_forward.1} parent=0
    #allocation2 [shape = 'u8[32768]{0}', space=vmem, size = 0x8000, scoped, tag = 'input window, operand 0']
    #allocation3 [shape = 'u8[32768]{0}', space=vmem, size = 0x8000, scoped, tag = 'output window, operand 0']
    loop: start=0, step=1, limit=6
    $region2: #{fnn_forward.1} parent=1 // loop_pre_header
      _
    $region3: #{fnn_forward.1} parent=1 // loop_header
      %s15 = sphi 0, %s19
      %p16 = scmp.ge.s32.totalorder %s15, 6
      %s22 = sphi 0, %s34
      %s23 = sphi 0, %s30
      %s24 = sphi 0, %s22
      %s25 = sphi 0, %s23
      %s26 = sphi 0, %s24
      %s27 = sphi 0, %s25
      %s39 = sphi 0, %s41
      %s42 = sphi 0, %s39
      %s43 = sphi 0, %s42
      %s59 = sphi 0, %s43
      %s63 = sphi 0, %s63
      %s65 = sphi 0, %s63
      %s66 = sphi 0, %s65
      %s80 = sphi 0, %s66
      %s84 = sphi 0, %s84
      %s86 = sphi 0, %s84
      %s87 = sphi 0, %s86
      %s101 = sphi 0, %s87
      %s105 = sphi 0, %s105
      %s107 = sphi 0, %s105
      %s108 = sphi 0, %s107
      %s122 = sphi 0, %s108
      %s126 = sphi 0, %s126
      %s128 = sphi 0, %s126
      %s129 = sphi 0, %s128
      %s143 = sphi 0, %s129
      %s147 = sphi 0, %s147
      %s149 = sphi 0, %s147
      %s150 = sphi 0, %s149
      %s164 = sphi 0, %s150
      %s168 = sphi 0, %s168
      %s170 = sphi 0, %s168
      %s171 = sphi 0, %s170
      %s185 = sphi 0, %s171
      %s189 = sphi 0, %s189
      %s191 = sphi 0, %s189
      %s192 = sphi 0, %s191
      %s206 = sphi 0, %s192
      %s210 = sphi 0, %s210
      %s212 = sphi 0, %s210
      %s213 = sphi 0, %s212
      %s227 = sphi 0, %s213
      %s235 = sphi 0, %s237
      %s238 = sphi 0, %s235
      %s239 = sphi 0, %s238
      %s255 = sphi 0, %s239
    $region4: #{fnn_forward.1} parent=1 // loop_header_branch
      %18 = sbr.rel (%p16) target = $region8
    $region5: #{fnn_forward.1} parent=1 // loop_body
      %s20 = ssub.s32 %s15, 1
      %s21 = ssub.s32 %s15, 2
      %s28 = sadd.s32 1, %s23
      %p29 = scmp.ge.s32.totalorder %s28, 2
      %s30 = scalar_select %p29, 0, %s28
      %s31 = sadd.s32 1, %s22
      %s32 = scalar_select %p29, %s31, %s22
      %p33 = scmp.ge.s32.totalorder %s32, 2
      %s34 = scalar_select %p33, 0, %s32
      %s35 = ssub.s32 %s22, %s34
      %s36 = ssub.s32 %s23, %s30
      %s37 = sor.u32 %s35, %s36
      %p38 = scmp.eq.s32.totalorder %s37, 0
      %s40 = sadd.s32 %s39, 1
      %s41 = scalar_select %p38, %s39, %s40
      %p44 = pneg %p38
      %p45 = scmp.eq.s32.totalorder %s15, 3
      %p46 = por %p44, %p45
      %p47 = scmp.ne.s32.totalorder %s39, %s42
      %p48 = scmp.eq.s32.totalorder %s15, 0
      %p49 = por %p47, %p48
      %p50 = scmp.ne.s32.totalorder %s39, %s42
      %p51 = scmp.eq.s32.totalorder %s20, 3
      %p52 = por %p50, %p51
      %p53 = scmp.ne.s32.totalorder %s42, %s43
      %p54 = scmp.eq.s32.totalorder %s20, 0
      %p55 = por %p53, %p54
      %p56 = scmp.ne.s32.totalorder %s42, %s43
      %p57 = scmp.eq.s32.totalorder %s21, 3
      %p58 = por %p56, %p57
      %p60 = scmp.ne.s32.totalorder %s43, %s59
      %p61 = scmp.eq.s32.totalorder %s21, 0
      %p62 = por %p60, %p61
      %s64 = sadd.s32 %s63, 1
      %p67 = scmp.eq.s32.totalorder %s15, 3
      %p68 = scmp.ne.s32.totalorder %s63, %s65
      %p69 = scmp.eq.s32.totalorder %s15, 0
      %p70 = por %p68, %p69
      %p71 = scmp.ne.s32.totalorder %s63, %s65
      %p72 = scmp.eq.s32.totalorder %s20, 3
      %p73 = por %p71, %p72
      %p74 = scmp.ne.s32.totalorder %s65, %s66
      %p75 = scmp.eq.s32.totalorder %s20, 0
      %p76 = por %p74, %p75
      %p77 = scmp.ne.s32.totalorder %s65, %s66
      %p78 = scmp.eq.s32.totalorder %s21, 3
      %p79 = por %p77, %p78
      %p81 = scmp.ne.s32.totalorder %s66, %s80
      %p82 = scmp.eq.s32.totalorder %s21, 0
      %p83 = por %p81, %p82
      %s85 = sadd.s32 %s84, 1
      %p88 = scmp.eq.s32.totalorder %s15, 3
      %p89 = scmp.ne.s32.totalorder %s84, %s86
      %p90 = scmp.eq.s32.totalorder %s15, 0
      %p91 = por %p89, %p90
      %p92 = scmp.ne.s32.totalorder %s84, %s86
      %p93 = scmp.eq.s32.totalorder %s20, 3
      %p94 = por %p92, %p93
      %p95 = scmp.ne.s32.totalorder %s86, %s87
      %p96 = scmp.eq.s32.totalorder %s20, 0
      %p97 = por %p95, %p96
      %p98 = scmp.ne.s32.totalorder %s86, %s87
      %p99 = scmp.eq.s32.totalorder %s21, 3
      %p100 = por %p98, %p99
      %p102 = scmp.ne.s32.totalorder %s87, %s101
      %p103 = scmp.eq.s32.totalorder %s21, 0
      %p104 = por %p102, %p103
      %s106 = sadd.s32 %s105, 1
      %p109 = scmp.eq.s32.totalorder %s15, 3
      %p110 = scmp.ne.s32.totalorder %s105, %s107
      %p111 = scmp.eq.s32.totalorder %s15, 0
      %p112 = por %p110, %p111
      %p113 = scmp.ne.s32.totalorder %s105, %s107
      %p114 = scmp.eq.s32.totalorder %s20, 3
      %p115 = por %p113, %p114
      %p116 = scmp.ne.s32.totalorder %s107, %s108
      %p117 = scmp.eq.s32.totalorder %s20, 0
      %p118 = por %p116, %p117
      %p119 = scmp.ne.s32.totalorder %s107, %s108
      %p120 = scmp.eq.s32.totalorder %s21, 3
      %p121 = por %p119, %p120
      %p123 = scmp.ne.s32.totalorder %s108, %s122
      %p124 = scmp.eq.s32.totalorder %s21, 0
      %p125 = por %p123, %p124
      %s127 = sadd.s32 %s126, 1
      %p130 = scmp.eq.s32.totalorder %s15, 3
      %p131 = scmp.ne.s32.totalorder %s126, %s128
      %p132 = scmp.eq.s32.totalorder %s15, 0
      %p133 = por %p131, %p132
      %p134 = scmp.ne.s32.totalorder %s126, %s128
      %p135 = scmp.eq.s32.totalorder %s20, 3
      %p136 = por %p134, %p135
      %p137 = scmp.ne.s32.totalorder %s128, %s129
      %p138 = scmp.eq.s32.totalorder %s20, 0
      %p139 = por %p137, %p138
      %p140 = scmp.ne.s32.totalorder %s128, %s129
      %p141 = scmp.eq.s32.totalorder %s21, 3
      %p142 = por %p140, %p141
      %p144 = scmp.ne.s32.totalorder %s129, %s143
      %p145 = scmp.eq.s32.totalorder %s21, 0
      %p146 = por %p144, %p145
      %s148 = sadd.s32 %s147, 1
      %p151 = scmp.eq.s32.totalorder %s15, 3
      %p152 = scmp.ne.s32.totalorder %s147, %s149
      %p153 = scmp.eq.s32.totalorder %s15, 0
      %p154 = por %p152, %p153
      %p155 = scmp.ne.s32.totalorder %s147, %s149
      %p156 = scmp.eq.s32.totalorder %s20, 3
      %p157 = por %p155, %p156
      %p158 = scmp.ne.s32.totalorder %s149, %s150
      %p159 = scmp.eq.s32.totalorder %s20, 0
      %p160 = por %p158, %p159
      %p161 = scmp.ne.s32.totalorder %s149, %s150
      %p162 = scmp.eq.s32.totalorder %s21, 3
      %p163 = por %p161, %p162
      %p165 = scmp.ne.s32.totalorder %s150, %s164
      %p166 = scmp.eq.s32.totalorder %s21, 0
      %p167 = por %p165, %p166
      %s169 = sadd.s32 %s168, 1
      %p172 = scmp.eq.s32.totalorder %s15, 3
      %p173 = scmp.ne.s32.totalorder %s168, %s170
      %p174 = scmp.eq.s32.totalorder %s15, 0
      %p175 = por %p173, %p174
      %p176 = scmp.ne.s32.totalorder %s168, %s170
      %p177 = scmp.eq.s32.totalorder %s20, 3
      %p178 = por %p176, %p177
      %p179 = scmp.ne.s32.totalorder %s170, %s171
      %p180 = scmp.eq.s32.totalorder %s20, 0
      %p181 = por %p179, %p180
      %p182 = scmp.ne.s32.totalorder %s170, %s171
      %p183 = scmp.eq.s32.totalorder %s21, 3
      %p184 = por %p182, %p183
      %p186 = scmp.ne.s32.totalorder %s171, %s185
      %p187 = scmp.eq.s32.totalorder %s21, 0
      %p188 = por %p186, %p187
      %s190 = sadd.s32 %s189, 1
      %p193 = scmp.eq.s32.totalorder %s15, 3
      %p194 = scmp.ne.s32.totalorder %s189, %s191
      %p195 = scmp.eq.s32.totalorder %s15, 0
      %p196 = por %p194, %p195
      %p197 = scmp.ne.s32.totalorder %s189, %s191
      %p198 = scmp.eq.s32.totalorder %s20, 3
      %p199 = por %p197, %p198
      %p200 = scmp.ne.s32.totalorder %s191, %s192
      %p201 = scmp.eq.s32.totalorder %s20, 0
      %p202 = por %p200, %p201
      %p203 = scmp.ne.s32.totalorder %s191, %s192
      %p204 = scmp.eq.s32.totalorder %s21, 3
      %p205 = por %p203, %p204
      %p207 = scmp.ne.s32.totalorder %s192, %s206
      %p208 = scmp.eq.s32.totalorder %s21, 0
      %p209 = por %p207, %p208
      %s211 = sadd.s32 %s210, 1
      %p214 = scmp.eq.s32.totalorder %s15, 3
      %p215 = scmp.ne.s32.totalorder %s210, %s212
      %p216 = scmp.eq.s32.totalorder %s15, 0
      %p217 = por %p215, %p216
      %p218 = scmp.ne.s32.totalorder %s210, %s212
      %p219 = scmp.eq.s32.totalorder %s20, 3
      %p220 = por %p218, %p219
      %p221 = scmp.ne.s32.totalorder %s212, %s213
      %p222 = scmp.eq.s32.totalorder %s20, 0
      %p223 = por %p221, %p222
      %p224 = scmp.ne.s32.totalorder %s212, %s213
      %p225 = scmp.eq.s32.totalorder %s21, 3
      %p226 = por %p224, %p225
      %p228 = scmp.ne.s32.totalorder %s213, %s227
      %p229 = scmp.eq.s32.totalorder %s21, 0
      %p230 = por %p228, %p229
      %s231 = ssub.s32 %s22, %s34
      %s232 = ssub.s32 %s23, %s30
      %s233 = sor.u32 %s231, %s232
      %p234 = scmp.eq.s32.totalorder %s233, 0
      %s236 = sadd.s32 %s235, 1
      %s237 = scalar_select %p234, %s235, %s236
      %p240 = pneg %p234
      %p241 = scmp.eq.s32.totalorder %s15, 3
      %p242 = por %p240, %p241
      %p243 = scmp.ne.s32.totalorder %s235, %s238
      %p244 = scmp.eq.s32.totalorder %s15, 0
      %p245 = por %p243, %p244
      %p246 = scmp.ne.s32.totalorder %s235, %s238
      %p247 = scmp.eq.s32.totalorder %s20, 3
      %p248 = por %p246, %p247
      %p249 = scmp.ne.s32.totalorder %s238, %s239
      %p250 = scmp.eq.s32.totalorder %s20, 0
      %p251 = por %p249, %p250
      %p252 = scmp.ne.s32.totalorder %s238, %s239
      %p253 = scmp.eq.s32.totalorder %s21, 3
      %p254 = por %p252, %p253
      %p256 = scmp.ne.s32.totalorder %s239, %s255
      %p257 = scmp.eq.s32.totalorder %s21, 0
      %p258 = por %p256, %p257
      %p259 = scmp.le.s32.totalorder 1, %s15
      %p260 = scmp.lt.s32.totalorder %s15, 5
      %p261 = pnand %p259, %p260
      %p262 = pneg %p261
      // Predicated region
      $region9: #{fnn_forward.1} parent=5 // pred_check
        _
      $region10: #{fnn_forward.1} parent=5 // pred_check_branch
        %264 = sbr.rel (%p261) target = $region12
      $region11: #{fnn_forward.1} parent=5 // pred_region
        %s265 = ssub.s32 %s15, 1
        // Predicated region
        $region13: #{fnn_forward.1} parent=11 // pred_check
          %p266 = pneg %p76
        $region14: #{fnn_forward.1} parent=11 // pred_check_branch
          %268 = sbr.rel (%p266) target = $region16
        $region15: #{fnn_forward.1} parent=11 // pred_region
          _
        $region16: #{fnn_forward.1} parent=11 // pred_fallthru
          _
        // Predicated region
        $region17: #{fnn_forward.1} parent=11 // pred_check
          %p269 = pneg %p97
        $region18: #{fnn_forward.1} parent=11 // pred_check_branch
          %271 = sbr.rel (%p269) target = $region20
        $region19: #{fnn_forward.1} parent=11 // pred_region
          _
        $region20: #{fnn_forward.1} parent=11 // pred_fallthru
          _
        // Predicated region
        $region21: #{fnn_forward.1} parent=11 // pred_check
          %p272 = pneg %p118
        $region22: #{fnn_forward.1} parent=11 // pred_check_branch
          %274 = sbr.rel (%p272) target = $region24
        $region23: #{fnn_forward.1} parent=11 // pred_region
          _
        $region24: #{fnn_forward.1} parent=11 // pred_fallthru
          _
        // Predicated region
        $region25: #{fnn_forward.1} parent=11 // pred_check
          %p275 = pneg %p139
        $region26: #{fnn_forward.1} parent=11 // pred_check_branch
          %277 = sbr.rel (%p275) target = $region28
        $region27: #{fnn_forward.1} parent=11 // pred_region
          _
        $region28: #{fnn_forward.1} parent=11 // pred_fallthru
          _
        // Predicated region
        $region29: #{fnn_forward.1} parent=11 // pred_check
          %p278 = pneg %p160
        $region30: #{fnn_forward.1} parent=11 // pred_check_branch
          %280 = sbr.rel (%p278) target = $region32
        $region31: #{fnn_forward.1} parent=11 // pred_region
          _
        $region32: #{fnn_forward.1} parent=11 // pred_fallthru
          _
        // Predicated region
        $region33: #{fnn_forward.1} parent=11 // pred_check
          %p281 = pneg %p181
        $region34: #{fnn_forward.1} parent=11 // pred_check_branch
          %283 = sbr.rel (%p281) target = $region36
        $region35: #{fnn_forward.1} parent=11 // pred_region
          _
        $region36: #{fnn_forward.1} parent=11 // pred_fallthru
          _
        // Predicated region
        $region37: #{fnn_forward.1} parent=11 // pred_check
          %p284 = pneg %p202
        $region38: #{fnn_forward.1} parent=11 // pred_check_branch
          %286 = sbr.rel (%p284) target = $region40
        $region39: #{fnn_forward.1} parent=11 // pred_region
          _
        $region40: #{fnn_forward.1} parent=11 // pred_fallthru
          _
        // Predicated region
        $region41: #{fnn_forward.1} parent=11 // pred_check
          %p287 = pneg %p223
        $region42: #{fnn_forward.1} parent=11 // pred_check_branch
          %289 = sbr.rel (%p287) target = $region44
        $region43: #{fnn_forward.1} parent=11 // pred_region
          _
        $region44: #{fnn_forward.1} parent=11 // pred_fallthru
          _
      $region12: #{fnn_forward.1} parent=5 // pred_fallthru
        _
      %p290 = scmp.lt.s32.totalorder %s15, 4
      // Predicated region
      $region45: #{fnn_forward.1} parent=5 // pred_check
        %p291 = pneg %p290
      $region46: #{fnn_forward.1} parent=5 // pred_check_branch
        %293 = sbr.rel (%p291) target = $region48
      $region47: #{fnn_forward.1} parent=5 // pred_region
        // Predicated region
        $region49: #{fnn_forward.1} parent=47 // pred_check
          %p294 = pneg %p49
        $region50: #{fnn_forward.1} parent=47 // pred_check_branch
          %296 = sbr.rel (%p294) target = $region52
        $region51: #{fnn_forward.1} parent=47 // pred_region
          %s297 = sand.u32 %s39, 1
          %s298 = sand.u32 %s39, 1
          %s299 = smul.addr %s298, 32
          %s300 = scalar_lea.vmem [#allocation2], %s299
          %s301 = smul.u32 4, %s22
          %s302 = smul.addr %s301, 2
          %s303 = sadd.s32 %s23, %s302
          %s304 = smul.addr %s303, 8
          %s305 = scalar_lea.vmem %s0, %s304
          // Predicated region
          $region53: #{fnn_forward.1} parent=51 // pred_check
            _
          $region54: #{fnn_forward.1} parent=51 // pred_check_branch
            %307 = sbr.rel (0) target = $region56
          $region55: #{fnn_forward.1} parent=51 // pred_region
            // Predicated region
            $region57: #{fnn_forward.1} parent=55 // pred_check
              _
            $region58: #{fnn_forward.1} parent=55 // pred_check_branch
              %309 = sbr.rel (0) target = $region60
            $region59: #{fnn_forward.1} parent=55 // pred_region
              // Predicated region
              $region72: #{fnn_forward.1} parent=59 // pred_check
                _
              $region73: #{fnn_forward.1} parent=59 // pred_check_branch
                %331 = sbr.rel (0) target = $region75
              $region74: #{fnn_forward.1} parent=59 // pred_region
                loop: start=0, step=1, limit=1
                $region76: #{fnn_forward.1} parent=74 // loop_pre_header
                  _
                $region77: #{fnn_forward.1} parent=74 // loop_header
                  %s333 = sphi 0, %s337
                  %p334 = scmp.ge.s32.totalorder %s333, 1
                  %s338 = sphi %s305, %s305
                  %s339 = sphi %s300, %s300
                $region78: #{fnn_forward.1} parent=74 // loop_header_branch
                  %336 = sbr.rel (%p334) target = $region82
                $region79: #{fnn_forward.1} parent=74 // loop_body
                  %v340 = vld [vmem:[%s338] sm:$0xff]
                  %341 = vst [vmem:[%s339] sm:$0xff] %v340
                  %v342 = vld [vmem:[%s338 + $0x10] sm:$0xff]
                  %343 = vst [vmem:[%s339 + $0x8] sm:$0xff] %v342
                  %v344 = vld [vmem:[%s338 + $0x20] sm:$0xff]
                  %345 = vst [vmem:[%s339 + $0x10] sm:$0xff] %v344
                  %v346 = vld [vmem:[%s338 + $0x30] sm:$0xff]
                  %347 = vst [vmem:[%s339 + $0x18] sm:$0xff] %v346
                $region80: #{fnn_forward.1} parent=74 // loop_footer
                  %s337 = sadd.s32 1, %s333
                $region81: #{fnn_forward.1} parent=74 // loop_footer_branch
                  %332 = sbr.rel target = $region77
                $region82: #{fnn_forward.1} parent=74 // loop_exit
                  _
              $region75: #{fnn_forward.1} parent=59 // pred_fallthru
                _
              // Predicated region
              $region83: #{fnn_forward.1} parent=59 // pred_check
                _
              $region84: #{fnn_forward.1} parent=59 // pred_check_branch
                %349 = sbr.rel target = $region86
              $region85: #{fnn_forward.1} parent=59 // pred_region
                _
              $region86: #{fnn_forward.1} parent=59 // pred_fallthru
                _
            $region60: #{fnn_forward.1} parent=55 // pred_fallthru
              _
            // Predicated region
            $region61: #{fnn_forward.1} parent=55 // pred_check
              _
            $region62: #{fnn_forward.1} parent=55 // pred_check_branch
              %311 = sbr.rel target = $region64
            $region63: #{fnn_forward.1} parent=55 // pred_region
              %s313 = ssub.s32 256, 1
              loop: start=0, step=1, limit=1
              $region65: #{fnn_forward.1} parent=63 // loop_pre_header
                _
              $region66: #{fnn_forward.1} parent=63 // loop_header
                %s315 = sphi 0, %s319
                %p316 = scmp.ge.s32.totalorder %s315, 1
                %s320 = sphi %s305, %s305
                %s321 = sphi %s300, %s300
              $region67: #{fnn_forward.1} parent=63 // loop_header_branch
                %318 = sbr.rel (%p316) target = $region71
              $region68: #{fnn_forward.1} parent=63 // loop_body
                %v322 = vld [vmem:[%s320] sm:%s313]
                %323 = vst [vmem:[%s321] sm:%s313] %v322
                %v324 = vld [vmem:[%s320 + $0x10] sm:%s313]
                %325 = vst [vmem:[%s321 + $0x8] sm:%s313] %v324
                %v326 = vld [vmem:[%s320 + $0x20] sm:%s313]
                %327 = vst [vmem:[%s321 + $0x10] sm:%s313] %v326
                %v328 = vld [vmem:[%s320 + $0x30] sm:%s313]
                %329 = vst [vmem:[%s321 + $0x18] sm:%s313] %v328
              $region69: #{fnn_forward.1} parent=63 // loop_footer
                %s319 = sadd.s32 1, %s315
              $region70: #{fnn_forward.1} parent=63 // loop_footer_branch
                %314 = sbr.rel target = $region66
              $region71: #{fnn_forward.1} parent=63 // loop_exit
                _
            $region64: #{fnn_forward.1} parent=55 // pred_fallthru
              _
          $region56: #{fnn_forward.1} parent=51 // pred_fallthru
            _
          %350 = vnop
        $region52: #{fnn_forward.1} parent=47 // pred_fallthru
          _
      $region48: #{fnn_forward.1} parent=5 // pred_fallthru
        _
      %p351 = scmp.le.s32.totalorder 1, %s15
      %p352 = scmp.lt.s32.totalorder %s15, 5
      %p353 = pnand %p351, %p352
      %p354 = pneg %p353
      // Predicated region
      $region87: #{fnn_forward.1} parent=5 // pred_check
        _
      $region88: #{fnn_forward.1} parent=5 // pred_check_branch
        %356 = sbr.rel (%p353) target = $region90
      $region89: #{fnn_forward.1} parent=5 // pred_region
        %s357 = ssub.s32 %s15, 1
        %s358 = sand.u32 %s42, 1
        %s359 = sand.u32 %s42, 1
        %s360 = smul.addr %s359, 32
        %s361 = scalar_lea.vmem [#allocation2], %s360
        // Predicated region
        $region91: #{fnn_forward.1} parent=89 // pred_check
          %p362 = pneg %p55
        $region92: #{fnn_forward.1} parent=89 // pred_check_branch
          %364 = sbr.rel (%p362) target = $region94
        $region93: #{fnn_forward.1} parent=89 // pred_region
          _
        $region94: #{fnn_forward.1} parent=89 // pred_fallthru
          _
        %s365 = sand.u32 %s42, 1
        %s366 = sand.u32 %s42, 1
        %s367 = smul.addr %s366, 32
        %s368 = scalar_lea.vmem [#allocation2], %s367
        %p369 = pneg %p55
        %p370 = pneg %p52
        %p371 = pneg %p76
        %p372 = pneg %p73
        %p373 = pneg %p97
        %p374 = pneg %p94
        %p375 = pneg %p118
        %p376 = pneg %p115
        %p377 = pneg %p139
        %p378 = pneg %p136
        %p379 = pneg %p160
        %p380 = pneg %p157
        %p381 = pneg %p181
        %p382 = pneg %p178
        %p383 = pneg %p202
        %p384 = pneg %p199
        %p385 = pneg %p223
        %p386 = pneg %p220
        %p387 = pneg %p251
        %p388 = pneg %p248
        %s389 = sand.u32 %s238, 1
        %s390 = sand.u32 %s238, 1
        %s391 = smul.addr %s390, 32
        %s392 = scalar_lea.vmem [#allocation3], %s391
        %s393 = smul.u32 4, %s24
        %s394 = smul.u32 4, %s24
        %v396 = vld [vmem:[%s361] sm:$0xff]
        %v397 = vld [vmem:[%s361 + $0x8] sm:$0xff]
        %v398 = vld [vmem:[%s361 + $0x10] sm:$0xff]
        %v399 = vld [vmem:[%s361 + $0x18] sm:$0xff]
        %v400 = vld [vmem:[%s1] sm:$0xff]
        %v401 = vld [vmem:[%s1 + $0x8] sm:$0xff]
        %v402 = vld [vmem:[%s1 + $0x10] sm:$0xff]
        %v403 = vld [vmem:[%s1 + $0x18] sm:$0xff]
        %v404 = vld [vmem:[%s2] sm:$0xff]
        %v405 = vld [vmem:[%s2 + $0x8] sm:$0xff]
        %v406 = vld [vmem:[%s2 + $0x10] sm:$0xff]
        %v407 = vld [vmem:[%s2 + $0x18] sm:$0xff]
        %v408 = vadd.f32 %v396, %v397
        %v409 = vadd.f32 %v408, %v398
        %v410 = vadd.f32 %v409, %v399
        %v411 = vrot.slane %v410, 4
        %v412 = vadd.f32 %v410, %v411
        %v413 = vrot.slane %v412, 2
        %v414 = vadd.f32 %v412, %v413
        %v415 = vrot.slane %v414, 1
        %v416 = vadd.f32 %v414, %v415
        %v417 = vmul.f32 %v416, 0.03125
        %v418 = vsub.f32 %v396, %v417
        %v419 = vsub.f32 %v397, %v417
        %v420 = vsub.f32 %v398, %v417
        %v421 = vsub.f32 %v399, %v417
        %v422 = vmul.f32 %v418, %v418
        %v423 = vmul.f32 %v419, %v419
        %v424 = vmul.f32 %v420, %v420
        %v425 = vmul.f32 %v421, %v421
        %v426 = vadd.f32 %v422, %v423
        %v427 = vadd.f32 %v426, %v424
        %v428 = vadd.f32 %v427, %v425
        %v429 = vrot.slane %v428, 4
        %v430 = vadd.f32 %v428, %v429
        %v431 = vrot.slane %v430, 2
        %v432 = vadd.f32 %v430, %v431
        %v433 = vrot.slane %v432, 1
        %v434 = vadd.f32 %v432, %v433
        %v435 = vmul.f32 %v434, 0.03125
        %v436 = vadd.f32 %v435, 1e-05
        %v437 = vrsqrt.pop %v436
        %v438 = vmul.f32 %v418, %v437
        %v439 = vmul.f32 %v419, %v437
        %v440 = vmul.f32 %v420, %v437
        %v441 = vmul.f32 %v421, %v437
        %443 = vset.pattern.permute.xlu0 0
        %444 = vperm.xlu0 %443, %v400
        %v445 = vpop.permute.xlu0 %444
        %448 = vset.pattern.permute.xlu0 0
        %449 = vperm.xlu0 %448, %v401
        %v450 = vpop.permute.xlu0 %449
        %453 = vset.pattern.permute.xlu0 0
        %454 = vperm.xlu0 %453, %v402
        %v455 = vpop.permute.xlu0 %454
        %458 = vset.pattern.permute.xlu0 0
        %459 = vperm.xlu0 %458, %v403
        %v460 = vpop.permute.xlu0 %459
        %v462 = vmul.f32 %v438, %v445
        %v463 = vmul.f32 %v439, %v450
        %v464 = vmul.f32 %v440, %v455
        %v465 = vmul.f32 %v441, %v460
        %467 = vset.pattern.permute.xlu0 0
        %468 = vperm.xlu0 %467, %v404
        %v469 = vpop.permute.xlu0 %468
        %472 = vset.pattern.permute.xlu0 0
        %473 = vperm.xlu0 %472, %v405
        %v474 = vpop.permute.xlu0 %473
        %477 = vset.pattern.permute.xlu0 0
        %478 = vperm.xlu0 %477, %v406
        %v479 = vpop.permute.xlu0 %478
        %482 = vset.pattern.permute.xlu0 0
        %483 = vperm.xlu0 %482, %v407
        %v484 = vpop.permute.xlu0 %483
        %v486 = vadd.f32 %v462, %v469
        %v487 = vadd.f32 %v463, %v474
        %v488 = vadd.f32 %v464, %v479
        %v489 = vadd.f32 %v465, %v484
        %v490 = vpack.c.bf16 %v487, %v486
        %v491 = vpack.c.bf16 %v489, %v488
        %v492 = vld [vmem:[%s3] sm:$0xf]
        %v493 = vld [vmem:[%s3 + $0x4] sm:$0xf]
        %v494 = vld [vmem:[%s3 + $0x8] sm:$0xf]
        %v495 = vld [vmem:[%s3 + $0xc] sm:$0xf]
        %v496 = vld [vmem:[%s4] sm:$0xff]
        %v497 = vld [vmem:[%s4 + $0x8] sm:$0xff]
        %v498 = vld [vmem:[%s4 + $0x10] sm:$0xff]
        %v499 = vld [vmem:[%s4 + $0x18] sm:$0xff]
        %501 = vset.pattern.permute.xlu0 0
        %502 = vperm.xlu0 %501, %v496
        %v503 = vpop.permute.xlu0 %502
        %506 = vset.pattern.permute.xlu0 0
        %507 = vperm.xlu0 %506, %v497
        %v508 = vpop.permute.xlu0 %507
        %511 = vset.pattern.permute.xlu0 0
        %512 = vperm.xlu0 %511, %v498
        %v513 = vpop.permute.xlu0 %512
        %516 = vset.pattern.permute.xlu0 0
        %517 = vperm.xlu0 %516, %v499
        %v518 = vpop.permute.xlu0 %517
        %v524 = vunpack.c.l.b16 %v492
        %v525 = vunpack.c.l.b16 %v493
        %v526 = vunpack.c.l.b16 %v494
        %v527 = vunpack.c.l.b16 %v495
        %v528 = vpack.c.b16 %v525, %v524
        %v529 = vpack.c.b16 %v527, %v526
        %vm530 = vcmask 130048
        %v532 = vsel %vm530, %v528, 0
        %v535 = vsel %vm530, %v529, 0
        %537 = vmatprep.subr.bf16.mxu0 0
        %538 = vmatpush1.bf16.msra.mxu0 0
        %539 = vmatprep.subr.bf16.mxu0 0
        %540 = vmatpush1.bf16.msra.mxu0 0
        %541 = vmatprep.subr.bf16.mxu0 0
        %542 = vmatpush1.bf16.msra.mxu0 0
        %543 = vmatprep.subr.bf16.mxu0 0
        %544 = vmatpush1.bf16.msra.mxu0 0
        %545 = vmatprep.subr.bf16.mxu0 0
        %546 = vmatpush1.bf16.msra.mxu0 0
        %547 = vmatprep.subr.bf16.mxu0 0
        %548 = vmatpush1.bf16.msra.mxu0 0
        %549 = vmatprep.subr.bf16.mxu0 0
        %550 = vmatpush1.bf16.msra.mxu0 0
        %551 = vmatprep.subr.bf16.mxu0 0
        %552 = vmatpush1.bf16.msra.mxu0 %v490
        %553 = vmatprep.subr.bf16.mxu0 0
        %554 = vmatpush2.bf16.msra.mxu0 0
        %555 = vmatprep.subr.bf16.mxu0 0
        %556 = vmatpush2.bf16.msra.mxu0 0
        %557 = vmatprep.subr.bf16.mxu0 0
        %558 = vmatpush2.bf16.msra.mxu0 0
        %559 = vmatprep.subr.bf16.mxu0 0
        %560 = vmatpush2.bf16.msra.mxu0 0
        %561 = vmatprep.subr.bf16.mxu0 0
        %562 = vmatpush2.bf16.msra.mxu0 0
        %563 = vmatprep.subr.bf16.mxu0 0
        %564 = vmatpush2.bf16.msra.mxu0 0
        %565 = vmatprep.subr.bf16.mxu0 0
        %566 = vmatpush2.bf16.msra.mxu0 0
        %567 = vmatprep.subr.bf16.mxu0 0
        %568 = vmatpush2.bf16.msra.mxu0 0
        %569 = vmatprep.mubr.bf16.mxu0 0
        %570 = vmatmul.mubr.bf16.gmra.mxu0 %v532
        %v571 = vpop.f32.mrf.mxu0
        %v572 = vadd.f32 %v503, %v571
        %v573 = vpop.f32.mrf.mxu0
        %v574 = vpop.f32.mrf.mxu0
        %v575 = vadd.f32 %v508, %v574
        %v576 = vpop.f32.mrf.mxu0
        %577 = vmatprep.mubr.bf16.mxu0 0
        %578 = vmatmul.mubr.bf16.gmra.mxu0 %v535
        %v579 = vpop.f32.mrf.mxu0
        %v580 = vadd.f32 %v513, %v579
        %v581 = vpop.f32.mrf.mxu0
        %v582 = vpop.f32.mrf.mxu0
        %v583 = vadd.f32 %v518, %v582
        %v584 = vpop.f32.mrf.mxu0
        %585 = vdwg.mxu0
        %v586 = vmul.f32 %v572, 0.5
        %v587 = vmul.f32 %v575, 0.5
        %v588 = vmul.f32 %v580, 0.5
        %v589 = vmul.f32 %v583, 0.5
        %v590 = vmul.f32 %v572, 0.70710677
        %v591 = vmul.f32 %v575, 0.70710677
        %v592 = vmul.f32 %v580, 0.70710677
        %v593 = vmul.f32 %v583, 0.70710677
        %vm594 = vcmp.ge.f32.partialorder %v590, 0.0
        %vm595 = vcmp.ge.f32.partialorder %v591, 0.0
        %vm596 = vcmp.ge.f32.partialorder %v592, 0.0
        %vm597 = vcmp.ge.f32.partialorder %v593, 0.0
        %v598 = vsel %vm594, 1.0, -1.0
        %v599 = vsel %vm595, 1.0, -1.0
        %v600 = vsel %vm596, 1.0, -1.0
        %v601 = vsel %vm597, 1.0, -1.0
        %v602 = vand.u32 2147483647, %v590
        %v603 = vand.u32 2147483647, %v591
        %v604 = vand.u32 2147483647, %v592
        %v605 = vand.u32 2147483647, %v593
        %v606 = vmul.f32 %v602, 0.3275911
        %v607 = vmul.f32 %v603, 0.3275911
        %v608 = vmul.f32 %v604, 0.3275911
        %v609 = vmul.f32 %v605, 0.3275911
        %v610 = vadd.f32 %v606, 1.0
        %v611 = vadd.f32 %v607, 1.0
        %v612 = vadd.f32 %v608, 1.0
        %v613 = vadd.f32 %v609, 1.0
        %v614 = vrcp.pop %v610
        %v615 = vrcp.pop %v611
        %v616 = vrcp.pop %v612
        %v617 = vrcp.pop %v613
        %v618 = vmul.f32 %v614, 1.0614054
        %v619 = vmul.f32 %v615, 1.0614054
        %v620 = vmul.f32 %v616, 1.0614054
        %v621 = vmul.f32 %v617, 1.0614054
        %v622 = vadd.f32 %v618, -1.4531521
        %v623 = vadd.f32 %v619, -1.4531521
        %v624 = vadd.f32 %v620, -1.4531521
        %v625 = vadd.f32 %v621, -1.4531521
        %v626 = vmul.f32 %v622, %v614
        %v627 = vmul.f32 %v623, %v615
        %v628 = vmul.f32 %v624, %v616
        %v629 = vmul.f32 %v625, %v617
        %v630 = vadd.f32 %v626, 1.4214138
        %v631 = vadd.f32 %v627, 1.4214138
        %v632 = vadd.f32 %v628, 1.4214138
        %v633 = vadd.f32 %v629, 1.4214138
        %v634 = vmul.f32 %v630, %v614
        %v635 = vmul.f32 %v631, %v615
        %v636 = vmul.f32 %v632, %v616
        %v637 = vmul.f32 %v633, %v617
        %v638 = vadd.f32 %v634, -0.28449672
        %v639 = vadd.f32 %v635, -0.28449672
        %v640 = vadd.f32 %v636, -0.28449672
        %v641 = vadd.f32 %v637, -0.28449672
        %v642 = vmul.f32 %v638, %v614
        %v643 = vmul.f32 %v639, %v615
        %v644 = vmul.f32 %v640, %v616
        %v645 = vmul.f32 %v641, %v617
        %v646 = vadd.f32 %v642, 0.2548296
        %v647 = vadd.f32 %v643, 0.2548296
        %v648 = vadd.f32 %v644, 0.2548296
        %v649 = vadd.f32 %v645, 0.2548296
        %v650 = vmul.f32 %v646, %v614
        %v651 = vmul.f32 %v647, %v615
        %v652 = vmul.f32 %v648, %v616
        %v653 = vmul.f32 %v649, %v617
        %v654 = vsub.f32 0.0, %v602
        %v655 = vsub.f32 0.0, %v603
        %v656 = vsub.f32 0.0, %v604
        %v657 = vsub.f32 0.0, %v605
        %v658 = vmul.f32 %v654, %v602
        %v659 = vmul.f32 %v655, %v603
        %v660 = vmul.f32 %v656, %v604
        %v661 = vmul.f32 %v657, %v605
        %v662 = vmul.f32 %v658, 1.442695
        %v663 = vpow.pop %v662
        %v664 = vmul.f32 %v659, 1.442695
        %v665 = vpow.pop %v664
        %v666 = vmul.f32 %v660, 1.442695
        %v667 = vpow.pop %v666
        %v668 = vmul.f32 %v661, 1.442695
        %v669 = vpow.pop %v668
        %v670 = vmul.f32 %v650, %v663
        %v671 = vmul.f32 %v651, %v665
        %v672 = vmul.f32 %v652, %v667
        %v673 = vmul.f32 %v653, %v669
        %v674 = vsub.f32 1.0, %v670
        %v675 = vsub.f32 1.0, %v671
        %v676 = vsub.f32 1.0, %v672
        %v677 = vsub.f32 1.0, %v673
        %v678 = vmul.f32 %v598, %v674
        %v679 = vmul.f32 %v599, %v675
        %v680 = vmul.f32 %v600, %v676
        %v681 = vmul.f32 %v601, %v677
        %v682 = vadd.f32 %v678, 1.0
        %v683 = vadd.f32 %v679, 1.0
        %v684 = vadd.f32 %v680, 1.0
        %v685 = vadd.f32 %v681, 1.0
        %v686 = vmul.f32 %v586, %v682
        %v687 = vmul.f32 %v587, %v683
        %v688 = vmul.f32 %v588, %v684
        %v689 = vmul.f32 %v589, %v685
        %v690 = vld [vmem:[%s5] sm:$0xf]
        %v691 = vld [vmem:[%s5 + $0x4] sm:$0xf]
        %v692 = vpack.c.bf16 %v687, %v686
        %v693 = vpack.c.bf16 %v689, %v688
        %v694 = vld [vmem:[%s6] sm:$0xff]
        %v695 = vld [vmem:[%s6 + $0x8] sm:$0xff]
        %697 = vset.pattern.permute.xlu0 0
        %698 = vperm.xlu0 %697, %v694
        %v699 = vpop.permute.xlu0 %698
        %702 = vset.pattern.permute.xlu0 0
        %703 = vperm.xlu0 %702, %v695
        %v704 = vpop.permute.xlu0 %703
        %v708 = vunpack.c.l.b16 %v690
        %v709 = vunpack.c.l.b16 %v691
        %v710 = vpack.c.b16 %v709, %v708
        %vm711 = vcmask 261120
        %v713 = vsel %vm711, %v710, 0
        %715 = vmatprep.subr.bf16.mxu0 0
        %716 = vmatpush1.bf16.msra.mxu0 0
        %717 = vmatprep.subr.bf16.mxu0 0
        %718 = vmatpush1.bf16.msra.mxu0 0
        %719 = vmatprep.subr.bf16.mxu0 0
        %720 = vmatpush1.bf16.msra.mxu0 0
        %721 = vmatprep.subr.bf16.mxu0 0
        %722 = vmatpush1.bf16.msra.mxu0 0
        %723 = vmatprep.subr.bf16.mxu0 0
        %724 = vmatpush1.bf16.msra.mxu0 0
        %725 = vmatprep.subr.bf16.mxu0 0
        %726 = vmatpush1.bf16.msra.mxu0 0
        %727 = vmatprep.subr.bf16.mxu0 0
        %728 = vmatpush1.bf16.msra.mxu0 %v693
        %729 = vmatprep.subr.bf16.mxu0 0
        %730 = vmatpush1.bf16.msra.mxu0 %v692
        %731 = vmatprep.subr.bf16.mxu0 0
        %732 = vmatpush2.bf16.msra.mxu0 0
        %733 = vmatprep.subr.bf16.mxu0 0
        %734 = vmatpush2.bf16.msra.mxu0 0
        %735 = vmatprep.subr.bf16.mxu0 0
        %736 = vmatpush2.bf16.msra.mxu0 0
        %737 = vmatprep.subr.bf16.mxu0 0
        %738 = vmatpush2.bf16.msra.mxu0 0
        %739 = vmatprep.subr.bf16.mxu0 0
        %740 = vmatpush2.bf16.msra.mxu0 0
        %741 = vmatprep.subr.bf16.mxu0 0
        %742 = vmatpush2.bf16.msra.mxu0 0
        %743 = vmatprep.subr.bf16.mxu0 0
        %744 = vmatpush2.bf16.msra.mxu0 0
        %745 = vmatprep.subr.bf16.mxu0 0
        %746 = vmatpush2.bf16.msra.mxu0 0
        %747 = vmatprep.mubr.bf16.mxu0 0
        %748 = vmatmul.mubr.bf16.gmra.mxu0 %v713
        %v749 = vpop.f32.mrf.mxu0
        %v750 = vadd.f32 %v699, %v749
        %v751 = vpop.f32.mrf.mxu0
        %v752 = vpop.f32.mrf.mxu0
        %v753 = vadd.f32 %v704, %v752
        %v754 = vpop.f32.mrf.mxu0
        %755 = vdwg.mxu0
        %s756 = scalar_lea.vmem %s3, 16
        %v757 = vld [vmem:[%s756] sm:$0xf]
        %v758 = vld [vmem:[%s756 + $0x4] sm:$0xf]
        %v759 = vld [vmem:[%s756 + $0x8] sm:$0xf]
        %v760 = vld [vmem:[%s756 + $0xc] sm:$0xf]
        %s761 = scalar_lea.vmem %s4, 32
        %v762 = vld [vmem:[%s761] sm:$0xff]
        %v763 = vld [vmem:[%s761 + $0x8] sm:$0xff]
        %v764 = vld [vmem:[%s761 + $0x10] sm:$0xff]
        %v765 = vld [vmem:[%s761 + $0x18] sm:$0xff]
        %767 = vset.pattern.permute.xlu0 0
        %768 = vperm.xlu0 %767, %v762
        %v769 = vpop.permute.xlu0 %768
        %772 = vset.pattern.permute.xlu0 0
        %773 = vperm.xlu0 %772, %v763
        %v774 = vpop.permute.xlu0 %773
        %777 = vset.pattern.permute.xlu0 0
        %778 = vperm.xlu0 %777, %v764
        %v779 = vpop.permute.xlu0 %778
        %782 = vset.pattern.permute.xlu0 0
        %783 = vperm.xlu0 %782, %v765
        %v784 = vpop.permute.xlu0 %783
        %v790 = vunpack.c.l.b16 %v757
        %v791 = vunpack.c.l.b16 %v758
        %v792 = vunpack.c.l.b16 %v759
        %v793 = vunpack.c.l.b16 %v760
        %v794 = vpack.c.b16 %v791, %v790
        %v795 = vpack.c.b16 %v793, %v792
        %v797 = vsel %vm530, %v794, 0
        %v800 = vsel %vm530, %v795, 0
        %802 = vmatprep.subr.bf16.mxu0 0
        %803 = vmatpush1.bf16.msra.mxu0 0
        %804 = vmatprep.subr.bf16.mxu0 0
        %805 = vmatpush1.bf16.msra.mxu0 0
        %806 = vmatprep.subr.bf16.mxu0 0
        %807 = vmatpush1.bf16.msra.mxu0 0
        %808 = vmatprep.subr.bf16.mxu0 0
        %809 = vmatpush1.bf16.msra.mxu0 0
        %810 = vmatprep.subr.bf16.mxu0 0
        %811 = vmatpush1.bf16.msra.mxu0 0
        %812 = vmatprep.subr.bf16.mxu0 0
        %813 = vmatpush1.bf16.msra.mxu0 0
        %814 = vmatprep.subr.bf16.mxu0 0
        %815 = vmatpush1.bf16.msra.mxu0 0
        %816 = vmatprep.subr.bf16.mxu0 0
        %817 = vmatpush1.bf16.msra.mxu0 %v491
        %818 = vmatprep.subr.bf16.mxu0 0
        %819 = vmatpush2.bf16.msra.mxu0 0
        %820 = vmatprep.subr.bf16.mxu0 0
        %821 = vmatpush2.bf16.msra.mxu0 0
        %822 = vmatprep.subr.bf16.mxu0 0
        %823 = vmatpush2.bf16.msra.mxu0 0
        %824 = vmatprep.subr.bf16.mxu0 0
        %825 = vmatpush2.bf16.msra.mxu0 0
        %826 = vmatprep.subr.bf16.mxu0 0
        %827 = vmatpush2.bf16.msra.mxu0 0
        %828 = vmatprep.subr.bf16.mxu0 0
        %829 = vmatpush2.bf16.msra.mxu0 0
        %830 = vmatprep.subr.bf16.mxu0 0
        %831 = vmatpush2.bf16.msra.mxu0 0
        %832 = vmatprep.subr.bf16.mxu0 0
        %833 = vmatpush2.bf16.msra.mxu0 0
        %834 = vmatprep.mubr.bf16.mxu0 0
        %835 = vmatmul.mubr.bf16.gmra.mxu0 %v797
        %v836 = vpop.f32.mrf.mxu0
        %v837 = vadd.f32 %v769, %v836
        %v838 = vpop.f32.mrf.mxu0
        %v839 = vpop.f32.mrf.mxu0
        %v840 = vadd.f32 %v774, %v839
        %v841 = vpop.f32.mrf.mxu0
        %842 = vmatprep.mubr.bf16.mxu0 0
        %843 = vmatmul.mubr.bf16.gmra.mxu0 %v800
        %v844 = vpop.f32.mrf.mxu0
        %v845 = vadd.f32 %v779, %v844
        %v846 = vpop.f32.mrf.mxu0
        %v847 = vpop.f32.mrf.mxu0
        %v848 = vadd.f32 %v784, %v847
        %v849 = vpop.f32.mrf.mxu0
        %850 = vdwg.mxu0
        %v851 = vmul.f32 %v837, 0.5
        %v852 = vmul.f32 %v840, 0.5
        %v853 = vmul.f32 %v845, 0.5
        %v854 = vmul.f32 %v848, 0.5
        %v855 = vmul.f32 %v837, 0.70710677
        %v856 = vmul.f32 %v840, 0.70710677
        %v857 = vmul.f32 %v845, 0.70710677
        %v858 = vmul.f32 %v848, 0.70710677
        %vm859 = vcmp.ge.f32.partialorder %v855, 0.0
        %vm860 = vcmp.ge.f32.partialorder %v856, 0.0
        %vm861 = vcmp.ge.f32.partialorder %v857, 0.0
        %vm862 = vcmp.ge.f32.partialorder %v858, 0.0
        %v863 = vsel %vm859, 1.0, -1.0
        %v864 = vsel %vm860, 1.0, -1.0
        %v865 = vsel %vm861, 1.0, -1.0
        %v866 = vsel %vm862, 1.0, -1.0
        %v867 = vand.u32 2147483647, %v855
        %v868 = vand.u32 2147483647, %v856
        %v869 = vand.u32 2147483647, %v857
        %v870 = vand.u32 2147483647, %v858
        %v871 = vmul.f32 %v867, 0.3275911
        %v872 = vmul.f32 %v868, 0.3275911
        %v873 = vmul.f32 %v869, 0.3275911
        %v874 = vmul.f32 %v870, 0.3275911
        %v875 = vadd.f32 %v871, 1.0
        %v876 = vadd.f32 %v872, 1.0
        %v877 = vadd.f32 %v873, 1.0
        %v878 = vadd.f32 %v874, 1.0
        %v879 = vrcp.pop %v875
        %v880 = vrcp.pop %v876
        %v881 = vrcp.pop %v877
        %v882 = vrcp.pop %v878
        %v883 = vmul.f32 %v879, 1.0614054
        %v884 = vmul.f32 %v880, 1.0614054
        %v885 = vmul.f32 %v881, 1.0614054
        %v886 = vmul.f32 %v882, 1.0614054
        %v887 = vadd.f32 %v883, -1.4531521
        %v888 = vadd.f32 %v884, -1.4531521
        %v889 = vadd.f32 %v885, -1.4531521
        %v890 = vadd.f32 %v886, -1.4531521
        %v891 = vmul.f32 %v887, %v879
        %v892 = vmul.f32 %v888, %v880
        %v893 = vmul.f32 %v889, %v881
        %v894 = vmul.f32 %v890, %v882
        %v895 = vadd.f32 %v891, 1.4214138
        %v896 = vadd.f32 %v892, 1.4214138
        %v897 = vadd.f32 %v893, 1.4214138
        %v898 = vadd.f32 %v894, 1.4214138
        %v899 = vmul.f32 %v895, %v879
        %v900 = vmul.f32 %v896, %v880
        %v901 = vmul.f32 %v897, %v881
        %v902 = vmul.f32 %v898, %v882
        %v903 = vadd.f32 %v899, -0.28449672
        %v904 = vadd.f32 %v900, -0.28449672
        %v905 = vadd.f32 %v901, -0.28449672
        %v906 = vadd.f32 %v902, -0.28449672
        %v907 = vmul.f32 %v903, %v879
        %v908 = vmul.f32 %v904, %v880
        %v909 = vmul.f32 %v905, %v881
        %v910 = vmul.f32 %v906, %v882
        %v911 = vadd.f32 %v907, 0.2548296
        %v912 = vadd.f32 %v908, 0.2548296
        %v913 = vadd.f32 %v909, 0.2548296
        %v914 = vadd.f32 %v910, 0.2548296
        %v915 = vmul.f32 %v911, %v879
        %v916 = vmul.f32 %v912, %v880
        %v917 = vmul.f32 %v913, %v881
        %v918 = vmul.f32 %v914, %v882
        %v919 = vsub.f32 0.0, %v867
        %v920 = vsub.f32 0.0, %v868
        %v921 = vsub.f32 0.0, %v869
        %v922 = vsub.f32 0.0, %v870
        %v923 = vmul.f32 %v919, %v867
        %v924 = vmul.f32 %v920, %v868
        %v925 = vmul.f32 %v921, %v869
        %v926 = vmul.f32 %v922, %v870
        %v927 = vmul.f32 %v923, 1.442695
        %v928 = vpow.pop %v927
        %v929 = vmul.f32 %v924, 1.442695
        %v930 = vpow.pop %v929
        %v931 = vmul.f32 %v925, 1.442695
        %v932 = vpow.pop %v931
        %v933 = vmul.f32 %v926, 1.442695
        %v934 = vpow.pop %v933
        %v935 = vmul.f32 %v915, %v928
        %v936 = vmul.f32 %v916, %v930
        %v937 = vmul.f32 %v917, %v932
        %v938 = vmul.f32 %v918, %v934
        %v939 = vsub.f32 1.0, %v935
        %v940 = vsub.f32 1.0, %v936
        %v941 = vsub.f32 1.0, %v937
        %v942 = vsub.f32 1.0, %v938
        %v943 = vmul.f32 %v863, %v939
        %v944 = vmul.f32 %v864, %v940
        %v945 = vmul.f32 %v865, %v941
        %v946 = vmul.f32 %v866, %v942
        %v947 = vadd.f32 %v943, 1.0
        %v948 = vadd.f32 %v944, 1.0
        %v949 = vadd.f32 %v945, 1.0
        %v950 = vadd.f32 %v946, 1.0
        %v951 = vmul.f32 %v851, %v947
        %v952 = vmul.f32 %v852, %v948
        %v953 = vmul.f32 %v853, %v949
        %v954 = vmul.f32 %v854, %v950
        %s955 = scalar_lea.vmem %s5, 8
        %v956 = vld [vmem:[%s955] sm:$0xf]
        %v957 = vld [vmem:[%s955 + $0x4] sm:$0xf]
        %v958 = vpack.c.bf16 %v952, %v951
        %v959 = vpack.c.bf16 %v954, %v953
        %s960 = scalar_lea.vmem %s6, 16
        %v961 = vld [vmem:[%s960] sm:$0xff]
        %v962 = vld [vmem:[%s960 + $0x8] sm:$0xff]
        %964 = vset.pattern.permute.xlu0 0
        %965 = vperm.xlu0 %964, %v961
        %v966 = vpop.permute.xlu0 %965
        %969 = vset.pattern.permute.xlu0 0
        %970 = vperm.xlu0 %969, %v962
        %v971 = vpop.permute.xlu0 %970
        %v975 = vunpack.c.l.b16 %v956
        %v976 = vunpack.c.l.b16 %v957
        %v977 = vpack.c.b16 %v976, %v975
        %v979 = vsel %vm711, %v977, 0
        %981 = vmatprep.subr.bf16.mxu0 0
        %982 = vmatpush1.bf16.msra.mxu0 0
        %983 = vmatprep.subr.bf16.mxu0 0
        %984 = vmatpush1.bf16.msra.mxu0 0
        %985 = vmatprep.subr.bf16.mxu0 0
        %986 = vmatpush1.bf16.msra.mxu0 0
        %987 = vmatprep.subr.bf16.mxu0 0
        %988 = vmatpush1.bf16.msra.mxu0 0
        %989 = vmatprep.subr.bf16.mxu0 0
        %990 = vmatpush1.bf16.msra.mxu0 0
        %991 = vmatprep.subr.bf16.mxu0 0
        %992 = vmatpush1.bf16.msra.mxu0 0
        %993 = vmatprep.subr.bf16.mxu0 0
        %994 = vmatpush1.bf16.msra.mxu0 %v959
        %995 = vmatprep.subr.bf16.mxu0 0
        %996 = vmatpush1.bf16.msra.mxu0 %v958
        %997 = vmatprep.subr.bf16.mxu0 0
        %998 = vmatpush2.bf16.msra.mxu0 0
        %999 = vmatprep.subr.bf16.mxu0 0
        %1000 = vmatpush2.bf16.msra.mxu0 0
        %1001 = vmatprep.subr.bf16.mxu0 0
        %1002 = vmatpush2.bf16.msra.mxu0 0
        %1003 = vmatprep.subr.bf16.mxu0 0
        %1004 = vmatpush2.bf16.msra.mxu0 0
        %1005 = vmatprep.subr.bf16.mxu0 0
        %1006 = vmatpush2.bf16.msra.mxu0 0
        %1007 = vmatprep.subr.bf16.mxu0 0
        %1008 = vmatpush2.bf16.msra.mxu0 0
        %1009 = vmatprep.subr.bf16.mxu0 0
        %1010 = vmatpush2.bf16.msra.mxu0 0
        %1011 = vmatprep.subr.bf16.mxu0 0
        %1012 = vmatpush2.bf16.msra.mxu0 0
        %1013 = vmatprep.mubr.bf16.mxu0 0
        %1014 = vmatmul.mubr.bf16.gmra.mxu0 %v979
        %v1015 = vpop.f32.mrf.mxu0
        %v1016 = vadd.f32 %v966, %v1015
        %v1017 = vpop.f32.mrf.mxu0
        %v1018 = vpop.f32.mrf.mxu0
        %v1019 = vadd.f32 %v971, %v1018
        %v1020 = vpop.f32.mrf.mxu0
        %1021 = vdwg.mxu0
        %v1022 = vadd.f32 %v396, %v750
        %v1023 = vadd.f32 %v397, %v753
        %v1024 = vadd.f32 %v398, %v1016
        %v1025 = vadd.f32 %v399, %v1019
        %v1026 = vld [vmem:[%s7] sm:$0xff]
        %v1027 = vld [vmem:[%s7 + $0x8] sm:$0xff]
        %v1028 = vld [vmem:[%s7 + $0x10] sm:$0xff]
        %v1029 = vld [vmem:[%s7 + $0x18] sm:$0xff]
        %v1030 = vld [vmem:[%s8] sm:$0xff]
        %v1031 = vld [vmem:[%s8 + $0x8] sm:$0xff]
        %v1032 = vld [vmem:[%s8 + $0x10] sm:$0xff]
        %v1033 = vld [vmem:[%s8 + $0x18] sm:$0xff]
        %v1034 = vadd.f32 %v1022, %v1023
        %v1035 = vadd.f32 %v1034, %v1024
        %v1036 = vadd.f32 %v1035, %v1025
        %v1037 = vrot.slane %v1036, 4
        %v1038 = vadd.f32 %v1036, %v1037
        %v1039 = vrot.slane %v1038, 2
        %v1040 = vadd.f32 %v1038, %v1039
        %v1041 = vrot.slane %v1040, 1
        %v1042 = vadd.f32 %v1040, %v1041
        %v1043 = vmul.f32 %v1042, 0.03125
        %v1044 = vsub.f32 %v1022, %v1043
        %v1045 = vsub.f32 %v1023, %v1043
        %v1046 = vsub.f32 %v1024, %v1043
        %v1047 = vsub.f32 %v1025, %v1043
        %v1048 = vmul.f32 %v1044, %v1044
        %v1049 = vmul.f32 %v1045, %v1045
        %v1050 = vmul.f32 %v1046, %v1046
        %v1051 = vmul.f32 %v1047, %v1047
        %v1052 = vadd.f32 %v1048, %v1049
        %v1053 = vadd.f32 %v1052, %v1050
        %v1054 = vadd.f32 %v1053, %v1051
        %v1055 = vrot.slane %v1054, 4
        %v1056 = vadd.f32 %v1054, %v1055
        %v1057 = vrot.slane %v1056, 2
        %v1058 = vadd.f32 %v1056, %v1057
        %v1059 = vrot.slane %v1058, 1
        %v1060 = vadd.f32 %v1058, %v1059
        %v1061 = vmul.f32 %v1060, 0.03125
        %v1062 = vadd.f32 %v1061, 1e-05
        %v1063 = vrsqrt.pop %v1062
        %v1064 = vmul.f32 %v1044, %v1063
        %v1065 = vmul.f32 %v1045, %v1063
        %v1066 = vmul.f32 %v1046, %v1063
        %v1067 = vmul.f32 %v1047, %v1063
        %1069 = vset.pattern.permute.xlu0 0
        %1070 = vperm.xlu0 %1069, %v1026
        %v1071 = vpop.permute.xlu0 %1070
        %1074 = vset.pattern.permute.xlu0 0
        %1075 = vperm.xlu0 %1074, %v1027
        %v1076 = vpop.permute.xlu0 %1075
        %1079 = vset.pattern.permute.xlu0 0
        %1080 = vperm.xlu0 %1079, %v1028
        %v1081 = vpop.permute.xlu0 %1080
        %1084 = vset.pattern.permute.xlu0 0
        %1085 = vperm.xlu0 %1084, %v1029
        %v1086 = vpop.permute.xlu0 %1085
        %v1088 = vmul.f32 %v1064, %v1071
        %v1089 = vmul.f32 %v1065, %v1076
        %v1090 = vmul.f32 %v1066, %v1081
        %v1091 = vmul.f32 %v1067, %v1086
        %1093 = vset.pattern.permute.xlu0 0
        %1094 = vperm.xlu0 %1093, %v1030
        %v1095 = vpop.permute.xlu0 %1094
        %1098 = vset.pattern.permute.xlu0 0
        %1099 = vperm.xlu0 %1098, %v1031
        %v1100 = vpop.permute.xlu0 %1099
        %1103 = vset.pattern.permute.xlu0 0
        %1104 = vperm.xlu0 %1103, %v1032
        %v1105 = vpop.permute.xlu0 %1104
        %1108 = vset.pattern.permute.xlu0 0
        %1109 = vperm.xlu0 %1108, %v1033
        %v1110 = vpop.permute.xlu0 %1109
        %v1112 = vadd.f32 %v1088, %v1095
        %v1113 = vadd.f32 %v1089, %v1100
        %v1114 = vadd.f32 %v1090, %v1105
        %v1115 = vadd.f32 %v1091, %v1110
        %1116 = vst [vmem:[%s392] sm:$0xff] %v1112
        %1117 = vst [vmem:[%s392 + $0x8] sm:$0xff] %v1113
        %1118 = vst [vmem:[%s392 + $0x10] sm:$0xff] %v1114
        %1119 = vst [vmem:[%s392 + $0x18] sm:$0xff] %v1115
        %s1120 = sand.u32 %s238, 1
        %s1121 = sand.u32 %s238, 1
        %s1122 = smul.addr %s1121, 32
        %s1123 = scalar_lea.vmem [#allocation3], %s1122
        // Predicated region
        $region95: #{fnn_forward.1} parent=89 // pred_check
          %p1124 = pneg %p248
        $region96: #{fnn_forward.1} parent=89 // pred_check_branch
          %1126 = sbr.rel (%p1124) target = $region98
        $region97: #{fnn_forward.1} parent=89 // pred_region
          %s1127 = smul.u32 4, %s24
          %s1128 = smul.addr %s1127, 2
          %s1129 = sadd.s32 %s25, %s1128
          %s1130 = smul.addr %s1129, 8
          %s1131 = scalar_lea.vmem %s9, %s1130
          // Predicated region
          $region99: #{fnn_forward.1} parent=97 // pred_check
            _
          $region100: #{fnn_forward.1} parent=97 // pred_check_branch
            %1133 = sbr.rel (0) target = $region102
          $region101: #{fnn_forward.1} parent=97 // pred_region
            // Predicated region
            $region103: #{fnn_forward.1} parent=101 // pred_check
              _
            $region104: #{fnn_forward.1} parent=101 // pred_check_branch
              %1135 = sbr.rel (0) target = $region106
            $region105: #{fnn_forward.1} parent=101 // pred_region
              // Predicated region
              $region118: #{fnn_forward.1} parent=105 // pred_check
                _
              $region119: #{fnn_forward.1} parent=105 // pred_check_branch
                %1157 = sbr.rel (0) target = $region121
              $region120: #{fnn_forward.1} parent=105 // pred_region
                loop: start=0, step=1, limit=1
                $region122: #{fnn_forward.1} parent=120 // loop_pre_header
                  _
                $region123: #{fnn_forward.1} parent=120 // loop_header
                  %s1159 = sphi 0, %s1163
                  %p1160 = scmp.ge.s32.totalorder %s1159, 1
                  %s1164 = sphi %s1123, %s1123
                  %s1165 = sphi %s1131, %s1131
                $region124: #{fnn_forward.1} parent=120 // loop_header_branch
                  %1162 = sbr.rel (%p1160) target = $region128
                $region125: #{fnn_forward.1} parent=120 // loop_body
                  %v1166 = vld [vmem:[%s1164] sm:$0xff]
                  %1167 = vst [vmem:[%s1165] sm:$0xff] %v1166
                  %v1168 = vld [vmem:[%s1164 + $0x8] sm:$0xff]
                  %1169 = vst [vmem:[%s1165 + $0x10] sm:$0xff] %v1168
                  %v1170 = vld [vmem:[%s1164 + $0x10] sm:$0xff]
                  %1171 = vst [vmem:[%s1165 + $0x20] sm:$0xff] %v1170
                  %v1172 = vld [vmem:[%s1164 + $0x18] sm:$0xff]
                  %1173 = vst [vmem:[%s1165 + $0x30] sm:$0xff] %v1172
                $region126: #{fnn_forward.1} parent=120 // loop_footer
                  %s1163 = sadd.s32 1, %s1159
                $region127: #{fnn_forward.1} parent=120 // loop_footer_branch
                  %1158 = sbr.rel target = $region123
                $region128: #{fnn_forward.1} parent=120 // loop_exit
                  _
              $region121: #{fnn_forward.1} parent=105 // pred_fallthru
                _
              // Predicated region
              $region129: #{fnn_forward.1} parent=105 // pred_check
                _
              $region130: #{fnn_forward.1} parent=105 // pred_check_branch
                %1175 = sbr.rel target = $region132
              $region131: #{fnn_forward.1} parent=105 // pred_region
                _
              $region132: #{fnn_forward.1} parent=105 // pred_fallthru
                _
            $region106: #{fnn_forward.1} parent=101 // pred_fallthru
              _
            // Predicated region
            $region107: #{fnn_forward.1} parent=101 // pred_check
              _
            $region108: #{fnn_forward.1} parent=101 // pred_check_branch
              %1137 = sbr.rel target = $region110
            $region109: #{fnn_forward.1} parent=101 // pred_region
              %s1139 = ssub.s32 256, 1
              loop: start=0, step=1, limit=1
              $region111: #{fnn_forward.1} parent=109 // loop_pre_header
                _
              $region112: #{fnn_forward.1} parent=109 // loop_header
                %s1141 = sphi 0, %s1145
                %p1142 = scmp.ge.s32.totalorder %s1141, 1
                %s1146 = sphi %s1123, %s1123
                %s1147 = sphi %s1131, %s1131
              $region113: #{fnn_forward.1} parent=109 // loop_header_branch
                %1144 = sbr.rel (%p1142) target = $region117
              $region114: #{fnn_forward.1} parent=109 // loop_body
                %v1148 = vld [vmem:[%s1146] sm:%s1139]
                %1149 = vst [vmem:[%s1147] sm:%s1139] %v1148
                %v1150 = vld [vmem:[%s1146 + $0x8] sm:%s1139]
                %1151 = vst [vmem:[%s1147 + $0x10] sm:%s1139] %v1150
                %v1152 = vld [vmem:[%s1146 + $0x10] sm:%s1139]
                %1153 = vst [vmem:[%s1147 + $0x20] sm:%s1139] %v1152
                %v1154 = vld [vmem:[%s1146 + $0x18] sm:%s1139]
                %1155 = vst [vmem:[%s1147 + $0x30] sm:%s1139] %v1154
              $region115: #{fnn_forward.1} parent=109 // loop_footer
                %s1145 = sadd.s32 1, %s1141
              $region116: #{fnn_forward.1} parent=109 // loop_footer_branch
                %1140 = sbr.rel target = $region112
              $region117: #{fnn_forward.1} parent=109 // loop_exit
                _
            $region110: #{fnn_forward.1} parent=101 // pred_fallthru
              _
          $region102: #{fnn_forward.1} parent=97 // pred_fallthru
            _
          %1176 = vnop
        $region98: #{fnn_forward.1} parent=89 // pred_fallthru
          _
      $region90: #{fnn_forward.1} parent=5 // pred_fallthru
        _
      %p1177 = scmp.le.s32.totalorder 2, %s15
      // Predicated region
      $region133: #{fnn_forward.1} parent=5 // pred_check
        %p1178 = pneg %p1177
      $region134: #{fnn_forward.1} parent=5 // pred_check_branch
        %1180 = sbr.rel (%p1178) target = $region136
      $region135: #{fnn_forward.1} parent=5 // pred_region
        %s1181 = ssub.s32 %s15, 2
        // Predicated region
        $region137: #{fnn_forward.1} parent=135 // pred_check
          %p1182 = pneg %p254
        $region138: #{fnn_forward.1} parent=135 // pred_check_branch
          %1184 = sbr.rel (%p1182) target = $region140
        $region139: #{fnn_forward.1} parent=135 // pred_region
          %s1185 = sand.u32 %s239, 1
          %s1186 = sand.u32 %s239, 1
          %s1187 = smul.addr %s1186, 32
          %s1188 = scalar_lea.vmem [#allocation3], %s1187
        $region140: #{fnn_forward.1} parent=135 // pred_fallthru
          _
      $region136: #{fnn_forward.1} parent=5 // pred_fallthru
        _
    $region6: #{fnn_forward.1} parent=1 // loop_footer
      %s19 = sadd.s32 1, %s15
    $region7: #{fnn_forward.1} parent=1 // loop_footer_branch
      %14 = sbr.rel target = $region3
    $region8: #{fnn_forward.1} parent=1 // loop_exit
      _

</llo_original>
